<compile_context>
chip_gen: v6e
topology: v6e:2x2x1
jax: 0.10.0
libtpu: 0.0.40
codegen_flags: <defaults>
</compile_context>

<pallas_src>
import functools
import math

import jax
import jax.numpy as jnp
from jax import lax
from jax.experimental import pallas as pl
from jax.experimental.pallas import tpu as pltpu


def _layer_norm_f32(x, g, b, eps):
    """LayerNorm in f32. x: (rows, D); g, b: (1, D)."""
    mu = jnp.mean(x, axis=-1, keepdims=True)
    var = jnp.mean((x - mu) ** 2, axis=-1, keepdims=True)
    return (x - mu) * lax.rsqrt(var + eps) * g + b


def _flash_layer_kernel(
    x_ref,                       # (S, D)   input slab for this batch element
    wq_ref, bq_ref,              # (D, D), (1, D)     Q projection
    wkv_ref, bkv_ref,            # (D, 2D), (1, 2D)   fused K|V projection
    wo3_ref, bo_ref,             # (H, hd, D), (1, D) output projection (head-split host-side)
    w1_ref, b1_ref,              # (D, F), (1, F)     FFN linear1
    w2_ref, b2_ref,              # (F, D), (1, D)     FFN linear2
    g1_ref, be1_ref,             # (1, D)             norm1 gamma/beta
    g2_ref, be2_ref,             # (1, D)             norm2 gamma/beta
    o_ref,                       # (TQ, D)            output tile
    k_scr, v_scr,                # (H, S, hd)  persistent per-batch-element K/V (compute dtype)
    q_scr,                       # (H, TQ, hd) per-tile head-major Q staging
    *, nhead, head_dim, tq, tk, eps, compute_dtype, approx_recip,
):
    qi = pl.program_id(1)
    S, D = x_ref.shape
    H, hd = nhead, head_dim
    cdt = compute_dtype
    scale = 1.0 / math.sqrt(head_dim)

    g1 = g1_ref[...].astype(jnp.float32)
    be1 = be1_ref[...].astype(jnp.float32)

    # ---- once per batch element: LN1 + fused KV projection, chunked over S (bounded VMEM spike)
    @pl.when(qi == 0)
    def _():
        def fill(c, carry):
            off = pl.multiple_of(c * tq, tq)
            xc = x_ref[pl.ds(off, tq), :].astype(jnp.float32)
            xn = _layer_norm_f32(xc, g1, be1, eps).astype(cdt)
            kv = jnp.dot(xn, wkv_ref[...], preferred_element_type=jnp.float32)
            kv = (kv + bkv_ref[...].astype(jnp.float32)).astype(cdt)       # (chunk, 2D)
            # Head-major relayout happens ONLY here (prologue), per chunk, never in the hot path.
            for h in range(H):
                lo = h * hd
                k_scr[h, pl.ds(off, tq), :] = kv[:, lo:lo + hd]
                v_scr[h, pl.ds(off, tq), :] = kv[:, D + lo:D + lo + hd]
            return carry
        lax.fori_loop(0, S // tq, fill, 0)

    # ---- per-tile Q: LN1(x_tile) @ Wq (no full-S Q scratch) ----
    row0 = pl.multiple_of(qi * tq, tq)
    x_tile = x_ref[pl.ds(row0, tq), :].astype(jnp.float32)                  # (TQ, D) f32
    xn1 = _layer_norm_f32(x_tile, g1, be1, eps).astype(cdt)
    q2d = jnp.dot(xn1, wq_ref[...], preferred_element_type=jnp.float32)
    q2d = ((q2d + bq_ref[...].astype(jnp.float32)) * scale).astype(cdt)     # fold 1/sqrt(hd) into Q
    for h in range(H):
        q_scr[h] = q2d[:, h * hd:(h + 1) * hd]
    qh = q_scr[...]                                                         # (H, TQ, hd)

    # ---- flash attention: online softmax over KV tiles (batched over heads, lane-dense) ----
    def kv_step(kvi, carry):
        m, l, acc = carry
        koff = pl.multiple_of(kvi * tk, tk)
        kt = k_scr[:, pl.ds(koff, tk), :]                                   # (H, TK, hd)
        vt = v_scr[:, pl.ds(koff, tk), :]
        s = jnp.einsum("hqd,hkd->hqk", qh, kt,
                       preferred_element_type=jnp.float32)                  # (H, TQ, TK)
        m_new = jnp.maximum(m, jnp.max(s, axis=-1, keepdims=True))
        alpha = jnp.exp(m - m_new)
        p = jnp.exp(s - m_new)
        l_new = alpha * l + jnp.sum(p, axis=-1, keepdims=True)
        acc_new = alpha * acc + jnp.einsum("hqk,hkd->hqd", p.astype(cdt), vt,
                                           preferred_element_type=jnp.float32)
        return m_new, l_new, acc_new

    m0 = jnp.full((H, tq, 1), -jnp.inf, jnp.float32)
    l0 = jnp.zeros((H, tq, 1), jnp.float32)
    a0 = jnp.zeros((H, tq, hd), jnp.float32)
    _, l_fin, acc = lax.fori_loop(0, S // tk, kv_step, (m0, l0, a0))

    if approx_recip:
        ctx = acc * pl.reciprocal(l_fin, approx=True)                       # opt-in EUP recip
    else:
        ctx = acc / l_fin                                                   # exact (default)

    # ---- output projection: Wo folded per head, accumulated into one (TQ, D) f32 buffer ----
    # (replaces the old lane-relayout concat of head slices in the hot path)
    ctx_c = ctx.astype(cdt)
    attn = jnp.zeros((tq, D), jnp.float32)
    for h in range(H):
        attn = attn + jnp.dot(ctx_c[h], wo3_ref[h], preferred_element_type=jnp.float32)
    attn = attn + bo_ref[...].astype(jnp.float32)

    x1 = x_tile + attn                                                      # residual 1 (f32)

    # ---- feed-forward for this tile (pre-norm, relu) ----
    xn2 = _layer_norm_f32(x1,
                          g2_ref[...].astype(jnp.float32),
                          be2_ref[...].astype(jnp.float32), eps).astype(cdt)
    h1 = jnp.dot(xn2, w1_ref[...], preferred_element_type=jnp.float32)
    h1 = jnp.maximum(h1 + b1_ref[...].astype(jnp.float32), 0.0).astype(cdt)
    ff = jnp.dot(h1, w2_ref[...], preferred_element_type=jnp.float32)
    ff = ff + b2_ref[...].astype(jnp.float32)

    o_ref[...] = (x1 + ff).astype(o_ref.dtype)                              # residual 2


def flash_transformer_layer(x, params, *, nhead, eps=1e-5, q_tile=None, kv_tile=None,
                            use_bf16_matmul=False, approx_softmax_recip=False,
                            vmem_limit_bytes=None):
    """x: (B, S, D). params: dict of weights stored (in, out) so kernel does x @ W + b.

    Returns (out, None) -- attention weights are None (output_attentions=False).
    """
    B, S, D = x.shape
    F = params["w1"].shape[1]
    assert D % nhead == 0, "d_model must be divisible by nhead"
    head_dim = D // nhead

    # Compute dtype for MXU operands (LN/softmax math is always f32).
    cdt = jnp.bfloat16 if (use_bf16_matmul and x.dtype == jnp.float32) else x.dtype
    cdt_bytes = jnp.dtype(cdt).itemsize
    x_bytes = jnp.dtype(x.dtype).itemsize

    # ---- host-side weight prep (all matmul weights in compute dtype, biases/LN params in f32) --
    wq_c = params["wq"].astype(cdt)
    wkv_c = jnp.concatenate([params["wk"], params["wv"]], axis=1).astype(cdt)   # (D, 2D)
    wo3_c = params["wo"].reshape(nhead, head_dim, D).astype(cdt)                # (H, hd, D)
    w1_c = params["w1"].astype(cdt)
    w2_c = params["w2"].astype(cdt)
    bq_f = params["bq"].astype(jnp.float32)
    bkv_f = jnp.concatenate([params["bk"], params["bv"]], axis=1).astype(jnp.float32)
    bo_f = params["bo"].astype(jnp.float32)
    b1_f = params["b1"].astype(jnp.float32)
    b2_f = params["b2"].astype(jnp.float32)
    g1_f = params["g1"].astype(jnp.float32)
    be1_f = params["be1"].astype(jnp.float32)
    g2_f = params["g2"].astype(jnp.float32)
    be2_f = params["be2"].astype(jnp.float32)

    def _nbytes(a):
        return int(a.size) * jnp.dtype(a.dtype).itemsize

    weights = (wq_c, bq_f, wkv_c, bkv_f, wo3_c, bo_f, w1_c, b1_f, w2_c, b2_f,
               g1_f, be1_f, g2_f, be2_f)
    weight_bytes = sum(_nbytes(w) for w in weights)

    # ---- automatic VMEM budget (per generation when queryable, conservative fallback) ----
    if vmem_limit_bytes is None:
        try:
            cap = int(pltpu.get_tpu_info().vmem_capacity_bytes)
        except Exception:
            cap = 64 * 1024 * 1024   # safe on every generation
        vmem_limit_bytes = max(32 * 1024 * 1024,
                               min(cap - 8 * 1024 * 1024, 100 * 1024 * 1024))
    budget = int(0.85 * vmem_limit_bytes)

    # ---- KV tile: largest of {512,256,128} dividing S, else full S ----
    if kv_tile is None:
        kv_tile = S
        for cand in (512, 256, 128):
            if S % cand == 0:
                kv_tile = cand
                break
    assert S % kv_tile == 0, "kv_tile must divide seq length"

    # ---- VMEM-aware q_tile: largest multiple-of-8 divisor whose live set fits the budget ----
    fixed_bytes = (weight_bytes
                   + 2 * S * D * cdt_bytes          # persistent K/V scratch
                   + 2 * S * D * x_bytes)           # double-buffered x slab

    def _live(tq_c):
        return (2 * nhead * tq_c * kv_tile * 4                 # scores + probs (f32)
                + nhead * tq_c * head_dim * (4 + cdt_bytes)    # acc (f32) + q_scr
                + tq_c * F * (4 + cdt_bytes)                   # FFN hidden
                + 4 * tq_c * D * 4                             # x_tile / x1 / attn / misc f32
                + 2 * tq_c * D * x_bytes)                      # double-buffered output

    if q_tile is None:
        chosen, smallest_div = None, None
        for cand in (256, 128, 64, 32, 16, 8):
            if S % cand != 0:
                continue
            smallest_div = cand
            if fixed_bytes + _live(cand) <= budget:
                chosen = cand
                break
        q_tile = chosen if chosen is not None else (smallest_div if smallest_div else S)
    assert S % q_tile == 0, "q_tile must divide seq length"
    assert q_tile % 8 == 0 or q_tile == S, "q_tile should be a multiple of 8"
    nq = S // q_tile

    # ---- specs ----
    w_spec = pl.BlockSpec(memory_space=pltpu.MemorySpace.VMEM)   # resident, untiled
    in_specs = [pl.BlockSpec((None, S, D), lambda b, qi: (b, 0, 0))] + [w_spec] * 14
    out_specs = pl.BlockSpec((None, q_tile, D), lambda b, qi: (b, qi, 0))

    kernel = functools.partial(
        _flash_layer_kernel, nhead=nhead, head_dim=head_dim, tq=q_tile, tk=kv_tile,
        eps=eps, compute_dtype=cdt, approx_recip=approx_softmax_recip)

    cost = pl.CostEstimate(
        flops=int(8 * B * S * D * D + 4 * B * S * D * F + 4 * B * S * S * D),
        transcendentals=int(B * nhead * S * S),
        bytes_accessed=int(2 * B * S * D * x_bytes + weight_bytes),
    )

    out = pl.pallas_call(
        kernel,
        out_shape=jax.ShapeDtypeStruct((B, S, D), x.dtype),
        grid_spec=pltpu.PrefetchScalarGridSpec(
            num_scalar_prefetch=0,
            grid=(B, nq),
            in_specs=in_specs,
            out_specs=out_specs,
            scratch_shapes=[
                pltpu.VMEM((nhead, S, head_dim), cdt),        # K scratch
                pltpu.VMEM((nhead, S, head_dim), cdt),        # V scratch
                pltpu.VMEM((nhead, q_tile, head_dim), cdt),   # per-tile head-major Q
            ],
        ),
        compiler_params=pltpu.CompilerParams(
            dimension_semantics=("parallel", "arbitrary"),
            vmem_limit_bytes=int(vmem_limit_bytes)),
        cost_estimate=cost,
    )(x, *weights)

    # TODO(synk): dropout layers are identity (inference mode); attention weights are None since
    # output_attentions defaults to False (flash path never materializes them).
    return out, None


def _reference(x, p, *, nhead, eps=1e-5):
    B, S, D = x.shape
    hd = D // nhead

    def ln(t, g, b):
        mu = jnp.mean(t, -1, keepdims=True)
        var = jnp.mean((t - mu) ** 2, -1, keepdims=True)
        return (t - mu) / jnp.sqrt(var + eps) * g + b

    xn = ln(x, p["g1"][0], p["be1"][0])
    q = xn @ p["wq"] + p["bq"][0]
    k = xn @ p["wk"] + p["bk"][0]
    v = xn @ p["wv"] + p["bv"][0]
    q = q.reshape(B, S, nhead, hd).transpose(0, 2, 1, 3)
    k = k.reshape(B, S, nhead, hd).transpose(0, 2, 1, 3)
    v = v.reshape(B, S, nhead, hd).transpose(0, 2, 1, 3)
    s = jnp.einsum("bhqd,bhkd->bhqk", q, k) / math.sqrt(hd)
    pw = jax.nn.softmax(s, axis=-1)
    o = jnp.einsum("bhqk,bhkd->bhqd", pw, v)
    o = o.transpose(0, 2, 1, 3).reshape(B, S, D)
    attn = o @ p["wo"] + p["bo"][0]
    x = x + attn
    xn2 = ln(x, p["g2"][0], p["be2"][0])
    ff = jnp.maximum(xn2 @ p["w1"] + p["b1"][0], 0.0) @ p["w2"] + p["b2"][0]
    return x + ff


if __name__ == "__main__":
    # Small demo shapes; q_tile=8 and kv_tile=8 exercise the multi-q-tile AND multi-kv-tile
    # (online softmax) paths: NQ=2, NK=2, 2 prologue chunks.
    B, S, D = 2, 16, 32
    NHEAD = 4
    FF = 128

    key = jax.random.PRNGKey(0)
    ks = jax.random.split(key, 16)

    def w(k, shape, scale=0.05):
        return (scale * jax.random.normal(k, shape)).astype(jnp.float32)

    params = {
        # attention projections, stored as (in, out) so kernel does x @ W + b
        "wq": w(ks[0], (D, D)), "wk": w(ks[1], (D, D)), "wv": w(ks[2], (D, D)),
        "bq": w(ks[3], (1, D)), "bk": w(ks[4], (1, D)), "bv": w(ks[5], (1, D)),
        "wo": w(ks[6], (D, D)), "bo": w(ks[7], (1, D)),
        # feed-forward
        "w1": w(ks[8], (D, FF)), "b1": w(ks[9], (1, FF)),
        "w2": w(ks[10], (FF, D)), "b2": w(ks[11], (1, D)),
        # layernorm affine params
        "g1": jnp.ones((1, D), jnp.float32), "be1": jnp.zeros((1, D), jnp.float32),
        "g2": jnp.ones((1, D), jnp.float32), "be2": jnp.zeros((1, D), jnp.float32),
    }

    x = jax.random.normal(ks[12], (B, S, D), dtype=jnp.float32)

    out, attn = flash_transformer_layer(x, params, nhead=NHEAD, q_tile=8, kv_tile=8,
                                        use_bf16_matmul=False)
    out = jax.block_until_ready(out)

    ref = _reference(x, params, nhead=NHEAD)
    assert out.shape == (B, S, D)
    assert attn is None
    max_err = float(jnp.max(jnp.abs(out - ref)))
    # Exact softmax normalization (no approx reciprocal) -> tight tolerance in f32.
    assert jnp.allclose(out, ref, atol=1e-4, rtol=1e-4), f"max err {max_err}"

    print("KERNEL_OK")
</pallas_src>

<mosaic_0001>
module attributes {stable_mosaic.version = 11 : i64} {
  func.func @_flash_layer_kernel(%arg0: i32, %arg1: i32, %arg2: memref<1x16x32xf32, #tpu.memory_space<vmem>>, %arg3: memref<32x32xf32, #tpu.memory_space<vmem>>, %arg4: memref<1x32xf32, #tpu.memory_space<vmem>>, %arg5: memref<32x64xf32, #tpu.memory_space<vmem>>, %arg6: memref<1x64xf32, #tpu.memory_space<vmem>>, %arg7: memref<4x8x32xf32, #tpu.memory_space<vmem>>, %arg8: memref<1x32xf32, #tpu.memory_space<vmem>>, %arg9: memref<32x128xf32, #tpu.memory_space<vmem>>, %arg10: memref<1x128xf32, #tpu.memory_space<vmem>>, %arg11: memref<128x32xf32, #tpu.memory_space<vmem>>, %arg12: memref<1x32xf32, #tpu.memory_space<vmem>>, %arg13: memref<1x32xf32, #tpu.memory_space<vmem>>, %arg14: memref<1x32xf32, #tpu.memory_space<vmem>>, %arg15: memref<1x32xf32, #tpu.memory_space<vmem>>, %arg16: memref<1x32xf32, #tpu.memory_space<vmem>>, %arg17: memref<1x8x32xf32, #tpu.memory_space<vmem>>, %arg18: memref<4x16x8xf32, #tpu.memory_space<vmem>>, %arg19: memref<4x16x8xf32, #tpu.memory_space<vmem>>, %arg20: memref<4x8x8xf32, #tpu.memory_space<vmem>>) attributes {dimension_semantics = [#tpu.dimension_semantics<parallel>, #tpu.dimension_semantics<arbitrary>], iteration_bounds = array<i64: 2, 2>, scalar_prefetch = 0 : i64, scratch_operands = 3 : i64, tpu.core_type = #tpu.core_type<tc>, window_params = [{transform_indices = @transform_0, window_bounds = array<i64: 1, 16, 32>}, {pipeline_mode = #tpu.pipeline_mode<synchronous>, transform_indices = @transform_1, window_bounds = array<i64: 32, 32>}, {pipeline_mode = #tpu.pipeline_mode<synchronous>, transform_indices = @transform_2, window_bounds = array<i64: 1, 32>}, {pipeline_mode = #tpu.pipeline_mode<synchronous>, transform_indices = @transform_3, window_bounds = array<i64: 32, 64>}, {pipeline_mode = #tpu.pipeline_mode<synchronous>, transform_indices = @transform_4, window_bounds = array<i64: 1, 64>}, {pipeline_mode = #tpu.pipeline_mode<synchronous>, transform_indices = @transform_5, window_bounds = array<i64: 4, 8, 32>}, {pipeline_mode = #tpu.pipeline_mode<synchronous>, transform_indices = @transform_6, window_bounds = array<i64: 1, 32>}, {pipeline_mode = #tpu.pipeline_mode<synchronous>, transform_indices = @transform_7, window_bounds = array<i64: 32, 128>}, {pipeline_mode = #tpu.pipeline_mode<synchronous>, transform_indices = @transform_8, window_bounds = array<i64: 1, 128>}, {pipeline_mode = #tpu.pipeline_mode<synchronous>, transform_indices = @transform_9, window_bounds = array<i64: 128, 32>}, {pipeline_mode = #tpu.pipeline_mode<synchronous>, transform_indices = @transform_10, window_bounds = array<i64: 1, 32>}, {pipeline_mode = #tpu.pipeline_mode<synchronous>, transform_indices = @transform_11, window_bounds = array<i64: 1, 32>}, {pipeline_mode = #tpu.pipeline_mode<synchronous>, transform_indices = @transform_12, window_bounds = array<i64: 1, 32>}, {pipeline_mode = #tpu.pipeline_mode<synchronous>, transform_indices = @transform_13, window_bounds = array<i64: 1, 32>}, {pipeline_mode = #tpu.pipeline_mode<synchronous>, transform_indices = @transform_14, window_bounds = array<i64: 1, 32>}, {transform_indices = @transform_15, window_bounds = array<i64: 1, 8, 32>}]} {
    %c0 = arith.constant 0 : index
    %c0_0 = arith.constant 0 : index
    %0 = vector.load %arg13[%c0, %c0_0] : memref<1x32xf32, #tpu.memory_space<vmem>>, vector<1x32xf32>
    %c0_1 = arith.constant 0 : index
    %c0_2 = arith.constant 0 : index
    %1 = vector.load %arg14[%c0_1, %c0_2] : memref<1x32xf32, #tpu.memory_space<vmem>>, vector<1x32xf32>
    %c0_i32 = arith.constant 0 : i32
    %2 = arith.cmpi eq, %arg1, %c0_i32 : i32
    %3 = arith.extui %2 : i1 to i32
    %c0_i32_3 = arith.constant 0 : i32
    %4 = arith.cmpi ne, %3, %c0_i32_3 : i32
    scf.if %4 {
      %c0_i32_75 = arith.constant 0 : i32
      %c2_i32_76 = arith.constant 2 : i32
      %132 = arith.addi %c0_i32_75, %c2_i32_76 : i32
      %c1_i32_77 = arith.constant 1 : i32
      scf.for %arg21 = %c0_i32_75 to %132 step %c1_i32_77  : i32 {
        %c8_i32_79 = arith.constant 8 : i32
        %133 = arith.muli %arg21, %c8_i32_79 : i32
        %134 = tpu.assume_multiple %133, 8 : i32
        %c0_80 = arith.constant 0 : index
        %135 = arith.index_cast %134 : i32 to index
        %c0_81 = arith.constant 0 : index
        %136 = vector.load %arg2[%c0_80, %135, %c0_81] : memref<1x16x32xf32, #tpu.memory_space<vmem>>, vector<1x8x32xf32>
        %137 = vector.shape_cast %136 : vector<1x8x32xf32> to vector<8x32xf32>
        %cst_82 = arith.constant dense<0.000000e+00> : vector<8xf32>
        %138 = vector.multi_reduction <add>, %137, %cst_82 [1] : vector<8x32xf32> to vector<8xf32>
        %139 = vector.shape_cast %138 : vector<8xf32> to vector<8x1xf32>
        %cst_83 = arith.constant 3.200000e+01 : f32
        %140 = vector.broadcast %cst_83 : f32 to vector<8x1xf32>
        %141 = arith.divf %139, %140 : vector<8x1xf32>
        %142 = vector.broadcast %141 : vector<8x1xf32> to vector<8x32xf32>
        %143 = arith.subf %137, %142 : vector<8x32xf32>
        %144 = arith.mulf %143, %143 : vector<8x32xf32>
        %cst_84 = arith.constant dense<0.000000e+00> : vector<8xf32>
        %145 = vector.multi_reduction <add>, %144, %cst_84 [1] : vector<8x32xf32> to vector<8xf32>
        %146 = vector.shape_cast %145 : vector<8xf32> to vector<8x1xf32>
        %cst_85 = arith.constant 3.200000e+01 : f32
        %147 = vector.broadcast %cst_85 : f32 to vector<8x1xf32>
        %148 = arith.divf %146, %147 : vector<8x1xf32>
        %149 = vector.broadcast %141 : vector<8x1xf32> to vector<8x32xf32>
        %150 = arith.subf %137, %149 : vector<8x32xf32>
        %cst_86 = arith.constant 9.99999974E-6 : f32
        %151 = vector.broadcast %cst_86 : f32 to vector<8x1xf32>
        %152 = arith.addf %148, %151 : vector<8x1xf32>
        %153 = math.rsqrt %152 : vector<8x1xf32>
        %154 = vector.broadcast %153 : vector<8x1xf32> to vector<8x32xf32>
        %155 = arith.mulf %150, %154 : vector<8x32xf32>
        %156 = vector.broadcast %0 : vector<1x32xf32> to vector<8x32xf32>
        %157 = arith.mulf %155, %156 : vector<8x32xf32>
        %158 = vector.broadcast %1 : vector<1x32xf32> to vector<8x32xf32>
        %159 = arith.addf %157, %158 : vector<8x32xf32>
        %c0_87 = arith.constant 0 : index
        %c0_88 = arith.constant 0 : index
        %160 = vector.load %arg5[%c0_87, %c0_88] : memref<32x64xf32, #tpu.memory_space<vmem>>, vector<32x64xf32>
        %cst_89 = arith.constant dense<0.000000e+00> : vector<8x64xf32>
        %161 = tpu.matmul %159, %160, %cst_89 {dimension_numbers = #tpu.dot_dimension_numbers<[1], [0], [0], [1], [0, 0, 1, 1], [], []>} : vector<8x32xf32>, vector<32x64xf32>, vector<8x64xf32> -> vector<8x64xf32>
        %c0_90 = arith.constant 0 : index
        %c0_91 = arith.constant 0 : index
        %162 = vector.load %arg6[%c0_90, %c0_91] : memref<1x64xf32, #tpu.memory_space<vmem>>, vector<1x64xf32>
        %163 = vector.broadcast %162 : vector<1x64xf32> to vector<8x64xf32>
        %164 = arith.addf %161, %163 : vector<8x64xf32>
        %165 = vector.extract_strided_slice %164 {offsets = [0, 0], sizes = [8, 8], strides = [1, 1]} : vector<8x64xf32> to vector<8x8xf32>
        %c0_92 = arith.constant 0 : index
        %166 = arith.index_cast %134 : i32 to index
        %c0_93 = arith.constant 0 : index
        %167 = vector.load %arg18[%c0_92, %166, %c0_93] : memref<4x16x8xf32, #tpu.memory_space<vmem>>, vector<1x8x8xf32>
        %168 = vector.shape_cast %167 : vector<1x8x8xf32> to vector<8x8xf32>
        %169 = vector.shape_cast %165 : vector<8x8xf32> to vector<1x8x8xf32>
        tpu.vector_store %arg18[%c0_92, %166, %c0_93], %169 {strides = array<i32>} : memref<4x16x8xf32, #tpu.memory_space<vmem>>, vector<1x8x8xf32>,
        %170 = vector.extract_strided_slice %164 {offsets = [0, 32], sizes = [8, 8], strides = [1, 1]} : vector<8x64xf32> to vector<8x8xf32>
        %c0_94 = arith.constant 0 : index
        %171 = arith.index_cast %134 : i32 to index
        %c0_95 = arith.constant 0 : index
        %172 = vector.load %arg19[%c0_94, %171, %c0_95] : memref<4x16x8xf32, #tpu.memory_space<vmem>>, vector<1x8x8xf32>
        %173 = vector.shape_cast %172 : vector<1x8x8xf32> to vector<8x8xf32>
        %174 = vector.shape_cast %170 : vector<8x8xf32> to vector<1x8x8xf32>
        tpu.vector_store %arg19[%c0_94, %171, %c0_95], %174 {strides = array<i32>} : memref<4x16x8xf32, #tpu.memory_space<vmem>>, vector<1x8x8xf32>,
        %175 = vector.extract_strided_slice %164 {offsets = [0, 8], sizes = [8, 8], strides = [1, 1]} : vector<8x64xf32> to vector<8x8xf32>
        %c1_96 = arith.constant 1 : index
        %176 = arith.index_cast %134 : i32 to index
        %c0_97 = arith.constant 0 : index
        %177 = vector.load %arg18[%c1_96, %176, %c0_97] : memref<4x16x8xf32, #tpu.memory_space<vmem>>, vector<1x8x8xf32>
        %178 = vector.shape_cast %177 : vector<1x8x8xf32> to vector<8x8xf32>
        %179 = vector.shape_cast %175 : vector<8x8xf32> to vector<1x8x8xf32>
        tpu.vector_store %arg18[%c1_96, %176, %c0_97], %179 {strides = array<i32>} : memref<4x16x8xf32, #tpu.memory_space<vmem>>, vector<1x8x8xf32>,
        %180 = vector.extract_strided_slice %164 {offsets = [0, 40], sizes = [8, 8], strides = [1, 1]} : vector<8x64xf32> to vector<8x8xf32>
        %c1_98 = arith.constant 1 : index
        %181 = arith.index_cast %134 : i32 to index
        %c0_99 = arith.constant 0 : index
        %182 = vector.load %arg19[%c1_98, %181, %c0_99] : memref<4x16x8xf32, #tpu.memory_space<vmem>>, vector<1x8x8xf32>
        %183 = vector.shape_cast %182 : vector<1x8x8xf32> to vector<8x8xf32>
        %184 = vector.shape_cast %180 : vector<8x8xf32> to vector<1x8x8xf32>
        tpu.vector_store %arg19[%c1_98, %181, %c0_99], %184 {strides = array<i32>} : memref<4x16x8xf32, #tpu.memory_space<vmem>>, vector<1x8x8xf32>,
        %185 = vector.extract_strided_slice %164 {offsets = [0, 16], sizes = [8, 8], strides = [1, 1]} : vector<8x64xf32> to vector<8x8xf32>
        %c2_100 = arith.constant 2 : index
        %186 = arith.index_cast %134 : i32 to index
        %c0_101 = arith.constant 0 : index
        %187 = vector.load %arg18[%c2_100, %186, %c0_101] : memref<4x16x8xf32, #tpu.memory_space<vmem>>, vector<1x8x8xf32>
        %188 = vector.shape_cast %187 : vector<1x8x8xf32> to vector<8x8xf32>
        %189 = vector.shape_cast %185 : vector<8x8xf32> to vector<1x8x8xf32>
        tpu.vector_store %arg18[%c2_100, %186, %c0_101], %189 {strides = array<i32>} : memref<4x16x8xf32, #tpu.memory_space<vmem>>, vector<1x8x8xf32>,
        %190 = vector.extract_strided_slice %164 {offsets = [0, 48], sizes = [8, 8], strides = [1, 1]} : vector<8x64xf32> to vector<8x8xf32>
        %c2_102 = arith.constant 2 : index
        %191 = arith.index_cast %134 : i32 to index
        %c0_103 = arith.constant 0 : index
        %192 = vector.load %arg19[%c2_102, %191, %c0_103] : memref<4x16x8xf32, #tpu.memory_space<vmem>>, vector<1x8x8xf32>
        %193 = vector.shape_cast %192 : vector<1x8x8xf32> to vector<8x8xf32>
        %194 = vector.shape_cast %190 : vector<8x8xf32> to vector<1x8x8xf32>
        tpu.vector_store %arg19[%c2_102, %191, %c0_103], %194 {strides = array<i32>} : memref<4x16x8xf32, #tpu.memory_space<vmem>>, vector<1x8x8xf32>,
        %195 = vector.extract_strided_slice %164 {offsets = [0, 24], sizes = [8, 8], strides = [1, 1]} : vector<8x64xf32> to vector<8x8xf32>
        %c3_104 = arith.constant 3 : index
        %196 = arith.index_cast %134 : i32 to index
        %c0_105 = arith.constant 0 : index
        %197 = vector.load %arg18[%c3_104, %196, %c0_105] : memref<4x16x8xf32, #tpu.memory_space<vmem>>, vector<1x8x8xf32>
        %198 = vector.shape_cast %197 : vector<1x8x8xf32> to vector<8x8xf32>
        %199 = vector.shape_cast %195 : vector<8x8xf32> to vector<1x8x8xf32>
        tpu.vector_store %arg18[%c3_104, %196, %c0_105], %199 {strides = array<i32>} : memref<4x16x8xf32, #tpu.memory_space<vmem>>, vector<1x8x8xf32>,
        %200 = vector.extract_strided_slice %164 {offsets = [0, 56], sizes = [8, 8], strides = [1, 1]} : vector<8x64xf32> to vector<8x8xf32>
        %c3_106 = arith.constant 3 : index
        %201 = arith.index_cast %134 : i32 to index
        %c0_107 = arith.constant 0 : index
        %202 = vector.load %arg19[%c3_106, %201, %c0_107] : memref<4x16x8xf32, #tpu.memory_space<vmem>>, vector<1x8x8xf32>
        %203 = vector.shape_cast %202 : vector<1x8x8xf32> to vector<8x8xf32>
        %204 = vector.shape_cast %200 : vector<8x8xf32> to vector<1x8x8xf32>
        tpu.vector_store %arg19[%c3_106, %201, %c0_107], %204 {strides = array<i32>} : memref<4x16x8xf32, #tpu.memory_space<vmem>>, vector<1x8x8xf32>,
      }
      %c2_i32_78 = arith.constant 2 : i32
    } else {
    }
    %c8_i32 = arith.constant 8 : i32
    %5 = arith.muli %arg1, %c8_i32 : i32
    %6 = tpu.assume_multiple %5, 8 : i32
    %c0_4 = arith.constant 0 : index
    %7 = arith.index_cast %6 : i32 to index
    %c0_5 = arith.constant 0 : index
    %8 = vector.load %arg2[%c0_4, %7, %c0_5] : memref<1x16x32xf32, #tpu.memory_space<vmem>>, vector<1x8x32xf32>
    %9 = vector.shape_cast %8 : vector<1x8x32xf32> to vector<8x32xf32>
    %cst = arith.constant dense<0.000000e+00> : vector<8xf32>
    %10 = vector.multi_reduction <add>, %9, %cst [1] : vector<8x32xf32> to vector<8xf32>
    %11 = vector.shape_cast %10 : vector<8xf32> to vector<8x1xf32>
    %cst_6 = arith.constant 3.200000e+01 : f32
    %12 = vector.broadcast %cst_6 : f32 to vector<8x1xf32>
    %13 = arith.divf %11, %12 : vector<8x1xf32>
    %14 = vector.broadcast %13 : vector<8x1xf32> to vector<8x32xf32>
    %15 = arith.subf %9, %14 : vector<8x32xf32>
    %16 = arith.mulf %15, %15 : vector<8x32xf32>
    %cst_7 = arith.constant dense<0.000000e+00> : vector<8xf32>
    %17 = vector.multi_reduction <add>, %16, %cst_7 [1] : vector<8x32xf32> to vector<8xf32>
    %18 = vector.shape_cast %17 : vector<8xf32> to vector<8x1xf32>
    %cst_8 = arith.constant 3.200000e+01 : f32
    %19 = vector.broadcast %cst_8 : f32 to vector<8x1xf32>
    %20 = arith.divf %18, %19 : vector<8x1xf32>
    %21 = vector.broadcast %13 : vector<8x1xf32> to vector<8x32xf32>
    %22 = arith.subf %9, %21 : vector<8x32xf32>
    %cst_9 = arith.constant 9.99999974E-6 : f32
    %23 = vector.broadcast %cst_9 : f32 to vector<8x1xf32>
    %24 = arith.addf %20, %23 : vector<8x1xf32>
    %25 = math.rsqrt %24 : vector<8x1xf32>
    %26 = vector.broadcast %25 : vector<8x1xf32> to vector<8x32xf32>
    %27 = arith.mulf %22, %26 : vector<8x32xf32>
    %28 = vector.broadcast %0 : vector<1x32xf32> to vector<8x32xf32>
    %29 = arith.mulf %27, %28 : vector<8x32xf32>
    %30 = vector.broadcast %1 : vector<1x32xf32> to vector<8x32xf32>
    %31 = arith.addf %29, %30 : vector<8x32xf32>
    %c0_10 = arith.constant 0 : index
    %c0_11 = arith.constant 0 : index
    %32 = vector.load %arg3[%c0_10, %c0_11] : memref<32x32xf32, #tpu.memory_space<vmem>>, vector<32x32xf32>
    %cst_12 = arith.constant dense<0.000000e+00> : vector<8x32xf32>
    %33 = tpu.matmul %31, %32, %cst_12 {dimension_numbers = #tpu.dot_dimension_numbers<[1], [0], [0], [1], [0, 0, 1, 1], [], []>} : vector<8x32xf32>, vector<32x32xf32>, vector<8x32xf32> -> vector<8x32xf32>
    %c0_13 = arith.constant 0 : index
    %c0_14 = arith.constant 0 : index
    %34 = vector.load %arg4[%c0_13, %c0_14] : memref<1x32xf32, #tpu.memory_space<vmem>>, vector<1x32xf32>
    %35 = vector.broadcast %34 : vector<1x32xf32> to vector<8x32xf32>
    %36 = arith.addf %33, %35 : vector<8x32xf32>
    %cst_15 = arith.constant 0.353553385 : f32
    %37 = vector.broadcast %cst_15 : f32 to vector<8x32xf32>
    %38 = arith.mulf %36, %37 : vector<8x32xf32>
    %39 = vector.extract_strided_slice %38 {offsets = [0, 0], sizes = [8, 8], strides = [1, 1]} : vector<8x32xf32> to vector<8x8xf32>
    %c0_16 = arith.constant 0 : index
    %c0_17 = arith.constant 0 : index
    %c0_18 = arith.constant 0 : index
    %40 = vector.load %arg20[%c0_16, %c0_17, %c0_18] : memref<4x8x8xf32, #tpu.memory_space<vmem>>, vector<1x8x8xf32>
    %41 = vector.shape_cast %40 : vector<1x8x8xf32> to vector<8x8xf32>
    %42 = vector.shape_cast %39 : vector<8x8xf32> to vector<1x8x8xf32>
    tpu.vector_store %arg20[%c0_16, %c0_17, %c0_18], %42 {strides = array<i32>} : memref<4x8x8xf32, #tpu.memory_space<vmem>>, vector<1x8x8xf32>,
    %43 = vector.extract_strided_slice %38 {offsets = [0, 8], sizes = [8, 8], strides = [1, 1]} : vector<8x32xf32> to vector<8x8xf32>
    %c1 = arith.constant 1 : index
    %c0_19 = arith.constant 0 : index
    %c0_20 = arith.constant 0 : index
    %44 = vector.load %arg20[%c1, %c0_19, %c0_20] : memref<4x8x8xf32, #tpu.memory_space<vmem>>, vector<1x8x8xf32>
    %45 = vector.shape_cast %44 : vector<1x8x8xf32> to vector<8x8xf32>
    %46 = vector.shape_cast %43 : vector<8x8xf32> to vector<1x8x8xf32>
    tpu.vector_store %arg20[%c1, %c0_19, %c0_20], %46 {strides = array<i32>} : memref<4x8x8xf32, #tpu.memory_space<vmem>>, vector<1x8x8xf32>,
    %47 = vector.extract_strided_slice %38 {offsets = [0, 16], sizes = [8, 8], strides = [1, 1]} : vector<8x32xf32> to vector<8x8xf32>
    %c2 = arith.constant 2 : index
    %c0_21 = arith.constant 0 : index
    %c0_22 = arith.constant 0 : index
    %48 = vector.load %arg20[%c2, %c0_21, %c0_22] : memref<4x8x8xf32, #tpu.memory_space<vmem>>, vector<1x8x8xf32>
    %49 = vector.shape_cast %48 : vector<1x8x8xf32> to vector<8x8xf32>
    %50 = vector.shape_cast %47 : vector<8x8xf32> to vector<1x8x8xf32>
    tpu.vector_store %arg20[%c2, %c0_21, %c0_22], %50 {strides = array<i32>} : memref<4x8x8xf32, #tpu.memory_space<vmem>>, vector<1x8x8xf32>,
    %51 = vector.extract_strided_slice %38 {offsets = [0, 24], sizes = [8, 8], strides = [1, 1]} : vector<8x32xf32> to vector<8x8xf32>
    %c3 = arith.constant 3 : index
    %c0_23 = arith.constant 0 : index
    %c0_24 = arith.constant 0 : index
    %52 = vector.load %arg20[%c3, %c0_23, %c0_24] : memref<4x8x8xf32, #tpu.memory_space<vmem>>, vector<1x8x8xf32>
    %53 = vector.shape_cast %52 : vector<1x8x8xf32> to vector<8x8xf32>
    %54 = vector.shape_cast %51 : vector<8x8xf32> to vector<1x8x8xf32>
    tpu.vector_store %arg20[%c3, %c0_23, %c0_24], %54 {strides = array<i32>} : memref<4x8x8xf32, #tpu.memory_space<vmem>>, vector<1x8x8xf32>,
    %c0_25 = arith.constant 0 : index
    %c0_26 = arith.constant 0 : index
    %c0_27 = arith.constant 0 : index
    %55 = vector.load %arg20[%c0_25, %c0_26, %c0_27] : memref<4x8x8xf32, #tpu.memory_space<vmem>>, vector<4x8x8xf32>
    %cst_28 = arith.constant 0xFF800000 : f32
    %56 = vector.broadcast %cst_28 : f32 to vector<4x8x1xf32>
    %cst_29 = arith.constant 0.000000e+00 : f32
    %57 = vector.broadcast %cst_29 : f32 to vector<4x8x1xf32>
    %cst_30 = arith.constant 0.000000e+00 : f32
    %58 = vector.broadcast %cst_30 : f32 to vector<4x8x8xf32>
    %c0_i32_31 = arith.constant 0 : i32
    %c2_i32 = arith.constant 2 : i32
    %59 = arith.addi %c0_i32_31, %c2_i32 : i32
    %c1_i32 = arith.constant 1 : i32
    %60:3 = scf.for %arg21 = %c0_i32_31 to %59 step %c1_i32 iter_args(%arg22 = %56, %arg23 = %57, %arg24 = %58) -> (vector<4x8x1xf32>, vector<4x8x1xf32>, vector<4x8x8xf32>)  : i32 {
      %c8_i32_75 = arith.constant 8 : i32
      %132 = arith.muli %arg21, %c8_i32_75 : i32
      %133 = tpu.assume_multiple %132, 8 : i32
      %c0_76 = arith.constant 0 : index
      %134 = arith.index_cast %133 : i32 to index
      %c0_77 = arith.constant 0 : index
      %135 = vector.load %arg18[%c0_76, %134, %c0_77] : memref<4x16x8xf32, #tpu.memory_space<vmem>>, vector<4x8x8xf32>
      %c0_78 = arith.constant 0 : index
      %136 = arith.index_cast %133 : i32 to index
      %c0_79 = arith.constant 0 : index
      %137 = vector.load %arg19[%c0_78, %136, %c0_79] : memref<4x16x8xf32, #tpu.memory_space<vmem>>, vector<4x8x8xf32>
      "tpu.trace_start"() <{level = 10 : i32, message = "hqd,hkd->hqk"}> : () -> ()
      %cst_80 = arith.constant dense<0.000000e+00> : vector<4x8x8xf32>
      %138 = tpu.matmul %55, %135, %cst_80 {dimension_numbers = #tpu.dot_dimension_numbers<[2], [2], [1], [1], [0, 0, 0, 1, 1, 1], [0], [0]>} : vector<4x8x8xf32>, vector<4x8x8xf32>, vector<4x8x8xf32> -> vector<4x8x8xf32>
      "tpu.trace_stop"() : () -> ()
      %cst_81 = arith.constant dense<0xFF800000> : vector<4x8xf32>
      %139 = vector.multi_reduction <maximumf>, %138, %cst_81 [2] : vector<4x8x8xf32> to vector<4x8xf32>
      %140 = vector.shape_cast %139 : vector<4x8xf32> to vector<4x8x1xf32>
      %141 = arith.maximumf %arg22, %140 : vector<4x8x1xf32>
      %142 = arith.subf %arg22, %141 : vector<4x8x1xf32>
      %143 = math.exp %142 : vector<4x8x1xf32>
      %144 = vector.broadcast %141 : vector<4x8x1xf32> to vector<4x8x8xf32>
      %145 = arith.subf %138, %144 : vector<4x8x8xf32>
      %146 = math.exp %145 : vector<4x8x8xf32>
      %147 = arith.mulf %143, %arg23 : vector<4x8x1xf32>
      %cst_82 = arith.constant dense<0.000000e+00> : vector<4x8xf32>
      %148 = vector.multi_reduction <add>, %146, %cst_82 [2] : vector<4x8x8xf32> to vector<4x8xf32>
      %149 = vector.shape_cast %148 : vector<4x8xf32> to vector<4x8x1xf32>
      %150 = arith.addf %147, %149 : vector<4x8x1xf32>
      %151 = vector.broadcast %143 : vector<4x8x1xf32> to vector<4x8x8xf32>
      %152 = arith.mulf %151, %arg24 : vector<4x8x8xf32>
      "tpu.trace_start"() <{level = 10 : i32, message = "hqk,hkd->hqd"}> : () -> ()
      %cst_83 = arith.constant dense<0.000000e+00> : vector<4x8x8xf32>
      %153 = tpu.matmul %146, %137, %cst_83 {dimension_numbers = #tpu.dot_dimension_numbers<[2], [1], [1], [2], [0, 0, 0, 1, 1, 2], [0], [0]>} : vector<4x8x8xf32>, vector<4x8x8xf32>, vector<4x8x8xf32> -> vector<4x8x8xf32>
      "tpu.trace_stop"() : () -> ()
      %154 = arith.addf %152, %153 : vector<4x8x8xf32>
      scf.yield %141, %150, %154 : vector<4x8x1xf32>, vector<4x8x1xf32>, vector<4x8x8xf32>
    }
    %c2_i32_32 = arith.constant 2 : i32
    %61 = vector.broadcast %60#1 : vector<4x8x1xf32> to vector<4x8x8xf32>
    %62 = arith.divf %60#2, %61 : vector<4x8x8xf32>
    %cst_33 = arith.constant 0.000000e+00 : f32
    %63 = vector.broadcast %cst_33 : f32 to vector<8x32xf32>
    %64 = vector.extract_strided_slice %62 {offsets = [0, 0, 0], sizes = [1, 8, 8], strides = [1, 1, 1]} : vector<4x8x8xf32> to vector<1x8x8xf32>
    %65 = vector.shape_cast %64 : vector<1x8x8xf32> to vector<8x8xf32>
    %c0_34 = arith.constant 0 : index
    %c0_35 = arith.constant 0 : index
    %c0_36 = arith.constant 0 : index
    %66 = vector.load %arg7[%c0_34, %c0_35, %c0_36] : memref<4x8x32xf32, #tpu.memory_space<vmem>>, vector<1x8x32xf32>
    %67 = vector.shape_cast %66 : vector<1x8x32xf32> to vector<8x32xf32>
    %cst_37 = arith.constant dense<0.000000e+00> : vector<8x32xf32>
    %68 = tpu.matmul %65, %67, %cst_37 {dimension_numbers = #tpu.dot_dimension_numbers<[1], [0], [0], [1], [0, 0, 1, 1], [], []>} : vector<8x8xf32>, vector<8x32xf32>, vector<8x32xf32> -> vector<8x32xf32>
    %69 = arith.addf %63, %68 : vector<8x32xf32>
    %70 = vector.extract_strided_slice %62 {offsets = [1, 0, 0], sizes = [1, 8, 8], strides = [1, 1, 1]} : vector<4x8x8xf32> to vector<1x8x8xf32>
    %71 = vector.shape_cast %70 : vector<1x8x8xf32> to vector<8x8xf32>
    %c1_38 = arith.constant 1 : index
    %c0_39 = arith.constant 0 : index
    %c0_40 = arith.constant 0 : index
    %72 = vector.load %arg7[%c1_38, %c0_39, %c0_40] : memref<4x8x32xf32, #tpu.memory_space<vmem>>, vector<1x8x32xf32>
    %73 = vector.shape_cast %72 : vector<1x8x32xf32> to vector<8x32xf32>
    %cst_41 = arith.constant dense<0.000000e+00> : vector<8x32xf32>
    %74 = tpu.matmul %71, %73, %cst_41 {dimension_numbers = #tpu.dot_dimension_numbers<[1], [0], [0], [1], [0, 0, 1, 1], [], []>} : vector<8x8xf32>, vector<8x32xf32>, vector<8x32xf32> -> vector<8x32xf32>
    %75 = arith.addf %69, %74 : vector<8x32xf32>
    %76 = vector.extract_strided_slice %62 {offsets = [2, 0, 0], sizes = [1, 8, 8], strides = [1, 1, 1]} : vector<4x8x8xf32> to vector<1x8x8xf32>
    %77 = vector.shape_cast %76 : vector<1x8x8xf32> to vector<8x8xf32>
    %c2_42 = arith.constant 2 : index
    %c0_43 = arith.constant 0 : index
    %c0_44 = arith.constant 0 : index
    %78 = vector.load %arg7[%c2_42, %c0_43, %c0_44] : memref<4x8x32xf32, #tpu.memory_space<vmem>>, vector<1x8x32xf32>
    %79 = vector.shape_cast %78 : vector<1x8x32xf32> to vector<8x32xf32>
    %cst_45 = arith.constant dense<0.000000e+00> : vector<8x32xf32>
    %80 = tpu.matmul %77, %79, %cst_45 {dimension_numbers = #tpu.dot_dimension_numbers<[1], [0], [0], [1], [0, 0, 1, 1], [], []>} : vector<8x8xf32>, vector<8x32xf32>, vector<8x32xf32> -> vector<8x32xf32>
    %81 = arith.addf %75, %80 : vector<8x32xf32>
    %82 = vector.extract_strided_slice %62 {offsets = [3, 0, 0], sizes = [1, 8, 8], strides = [1, 1, 1]} : vector<4x8x8xf32> to vector<1x8x8xf32>
    %83 = vector.shape_cast %82 : vector<1x8x8xf32> to vector<8x8xf32>
    %c3_46 = arith.constant 3 : index
    %c0_47 = arith.constant 0 : index
    %c0_48 = arith.constant 0 : index
    %84 = vector.load %arg7[%c3_46, %c0_47, %c0_48] : memref<4x8x32xf32, #tpu.memory_space<vmem>>, vector<1x8x32xf32>
    %85 = vector.shape_cast %84 : vector<1x8x32xf32> to vector<8x32xf32>
    %cst_49 = arith.constant dense<0.000000e+00> : vector<8x32xf32>
    %86 = tpu.matmul %83, %85, %cst_49 {dimension_numbers = #tpu.dot_dimension_numbers<[1], [0], [0], [1], [0, 0, 1, 1], [], []>} : vector<8x8xf32>, vector<8x32xf32>, vector<8x32xf32> -> vector<8x32xf32>
    %87 = arith.addf %81, %86 : vector<8x32xf32>
    %c0_50 = arith.constant 0 : index
    %c0_51 = arith.constant 0 : index
    %88 = vector.load %arg8[%c0_50, %c0_51] : memref<1x32xf32, #tpu.memory_space<vmem>>, vector<1x32xf32>
    %89 = vector.broadcast %88 : vector<1x32xf32> to vector<8x32xf32>
    %90 = arith.addf %87, %89 : vector<8x32xf32>
    %91 = arith.addf %9, %90 : vector<8x32xf32>
    %c0_52 = arith.constant 0 : index
    %c0_53 = arith.constant 0 : index
    %92 = vector.load %arg15[%c0_52, %c0_53] : memref<1x32xf32, #tpu.memory_space<vmem>>, vector<1x32xf32>
    %c0_54 = arith.constant 0 : index
    %c0_55 = arith.constant 0 : index
    %93 = vector.load %arg16[%c0_54, %c0_55] : memref<1x32xf32, #tpu.memory_space<vmem>>, vector<1x32xf32>
    %cst_56 = arith.constant dense<0.000000e+00> : vector<8xf32>
    %94 = vector.multi_reduction <add>, %91, %cst_56 [1] : vector<8x32xf32> to vector<8xf32>
    %95 = vector.shape_cast %94 : vector<8xf32> to vector<8x1xf32>
    %cst_57 = arith.constant 3.200000e+01 : f32
    %96 = vector.broadcast %cst_57 : f32 to vector<8x1xf32>
    %97 = arith.divf %95, %96 : vector<8x1xf32>
    %98 = vector.broadcast %97 : vector<8x1xf32> to vector<8x32xf32>
    %99 = arith.subf %91, %98 : vector<8x32xf32>
    %100 = arith.mulf %99, %99 : vector<8x32xf32>
    %cst_58 = arith.constant dense<0.000000e+00> : vector<8xf32>
    %101 = vector.multi_reduction <add>, %100, %cst_58 [1] : vector<8x32xf32> to vector<8xf32>
    %102 = vector.shape_cast %101 : vector<8xf32> to vector<8x1xf32>
    %cst_59 = arith.constant 3.200000e+01 : f32
    %103 = vector.broadcast %cst_59 : f32 to vector<8x1xf32>
    %104 = arith.divf %102, %103 : vector<8x1xf32>
    %105 = vector.broadcast %97 : vector<8x1xf32> to vector<8x32xf32>
    %106 = arith.subf %91, %105 : vector<8x32xf32>
    %cst_60 = arith.constant 9.99999974E-6 : f32
    %107 = vector.broadcast %cst_60 : f32 to vector<8x1xf32>
    %108 = arith.addf %104, %107 : vector<8x1xf32>
    %109 = math.rsqrt %108 : vector<8x1xf32>
    %110 = vector.broadcast %109 : vector<8x1xf32> to vector<8x32xf32>
    %111 = arith.mulf %106, %110 : vector<8x32xf32>
    %112 = vector.broadcast %92 : vector<1x32xf32> to vector<8x32xf32>
    %113 = arith.mulf %111, %112 : vector<8x32xf32>
    %114 = vector.broadcast %93 : vector<1x32xf32> to vector<8x32xf32>
    %115 = arith.addf %113, %114 : vector<8x32xf32>
    %c0_61 = arith.constant 0 : index
    %c0_62 = arith.constant 0 : index
    %116 = vector.load %arg9[%c0_61, %c0_62] : memref<32x128xf32, #tpu.memory_space<vmem>>, vector<32x128xf32>
    %cst_63 = arith.constant dense<0.000000e+00> : vector<8x128xf32>
    %117 = tpu.matmul %115, %116, %cst_63 {dimension_numbers = #tpu.dot_dimension_numbers<[1], [0], [0], [1], [0, 0, 1, 1], [], []>} : vector<8x32xf32>, vector<32x128xf32>, vector<8x128xf32> -> vector<8x128xf32>
    %c0_64 = arith.constant 0 : index
    %c0_65 = arith.constant 0 : index
    %118 = vector.load %arg10[%c0_64, %c0_65] : memref<1x128xf32, #tpu.memory_space<vmem>>, vector<1x128xf32>
    %119 = vector.broadcast %118 : vector<1x128xf32> to vector<8x128xf32>
    %120 = arith.addf %117, %119 : vector<8x128xf32>
    %cst_66 = arith.constant 0.000000e+00 : f32
    %121 = vector.broadcast %cst_66 : f32 to vector<8x128xf32>
    %122 = arith.maximumf %120, %121 : vector<8x128xf32>
    %c0_67 = arith.constant 0 : index
    %c0_68 = arith.constant 0 : index
    %123 = vector.load %arg11[%c0_67, %c0_68] : memref<128x32xf32, #tpu.memory_space<vmem>>, vector<128x32xf32>
    %cst_69 = arith.constant dense<0.000000e+00> : vector<8x32xf32>
    %124 = tpu.matmul %122, %123, %cst_69 {dimension_numbers = #tpu.dot_dimension_numbers<[1], [0], [0], [1], [0, 0, 1, 1], [], []>} : vector<8x128xf32>, vector<128x32xf32>, vector<8x32xf32> -> vector<8x32xf32>
    %c0_70 = arith.constant 0 : index
    %c0_71 = arith.constant 0 : index
    %125 = vector.load %arg12[%c0_70, %c0_71] : memref<1x32xf32, #tpu.memory_space<vmem>>, vector<1x32xf32>
    %126 = vector.broadcast %125 : vector<1x32xf32> to vector<8x32xf32>
    %127 = arith.addf %124, %126 : vector<8x32xf32>
    %128 = arith.addf %91, %127 : vector<8x32xf32>
    %c0_72 = arith.constant 0 : index
    %c0_73 = arith.constant 0 : index
    %c0_74 = arith.constant 0 : index
    %129 = vector.load %arg17[%c0_72, %c0_73, %c0_74] : memref<1x8x32xf32, #tpu.memory_space<vmem>>, vector<1x8x32xf32>
    %130 = vector.shape_cast %129 : vector<1x8x32xf32> to vector<8x32xf32>
    %131 = vector.shape_cast %128 : vector<8x32xf32> to vector<1x8x32xf32>
    tpu.vector_store %arg17[%c0_72, %c0_73, %c0_74], %131 {strides = array<i32>} : memref<1x8x32xf32, #tpu.memory_space<vmem>>, vector<1x8x32xf32>,
    return
  }
  func.func @transform_0(%arg0: i32, %arg1: i32) -> (i32, i32, i32) {
    %c0_i32 = arith.constant 0 : i32
    %c0_i32_0 = arith.constant 0 : i32
    %c0_i32_1 = arith.constant 0 : i32
    return %arg0, %c0_i32, %c0_i32_0 : i32, i32, i32
  }
  func.func @transform_1(%arg0: i32, %arg1: i32) -> (i32, i32) {
    %c0_i32 = arith.constant 0 : i32
    %c0_i32_0 = arith.constant 0 : i32
    %c0_i32_1 = arith.constant 0 : i32
    return %c0_i32, %c0_i32_0 : i32, i32
  }
  func.func @transform_2(%arg0: i32, %arg1: i32) -> (i32, i32) {
    %c0_i32 = arith.constant 0 : i32
    %c0_i32_0 = arith.constant 0 : i32
    %c0_i32_1 = arith.constant 0 : i32
    return %c0_i32, %c0_i32_0 : i32, i32
  }
  func.func @transform_3(%arg0: i32, %arg1: i32) -> (i32, i32) {
    %c0_i32 = arith.constant 0 : i32
    %c0_i32_0 = arith.constant 0 : i32
    %c0_i32_1 = arith.constant 0 : i32
    return %c0_i32, %c0_i32_0 : i32, i32
  }
  func.func @transform_4(%arg0: i32, %arg1: i32) -> (i32, i32) {
    %c0_i32 = arith.constant 0 : i32
    %c0_i32_0 = arith.constant 0 : i32
    %c0_i32_1 = arith.constant 0 : i32
    return %c0_i32, %c0_i32_0 : i32, i32
  }
  func.func @transform_5(%arg0: i32, %arg1: i32) -> (i32, i32, i32) {
    %c0_i32 = arith.constant 0 : i32
    %c0_i32_0 = arith.constant 0 : i32
    %c0_i32_1 = arith.constant 0 : i32
    %c0_i32_2 = arith.constant 0 : i32
    return %c0_i32, %c0_i32_0, %c0_i32_1 : i32, i32, i32
  }
  func.func @transform_6(%arg0: i32, %arg1: i32) -> (i32, i32) {
    %c0_i32 = arith.constant 0 : i32
    %c0_i32_0 = arith.constant 0 : i32
    %c0_i32_1 = arith.constant 0 : i32
    return %c0_i32, %c0_i32_0 : i32, i32
  }
  func.func @transform_7(%arg0: i32, %arg1: i32) -> (i32, i32) {
    %c0_i32 = arith.constant 0 : i32
    %c0_i32_0 = arith.constant 0 : i32
    %c0_i32_1 = arith.constant 0 : i32
    return %c0_i32, %c0_i32_0 : i32, i32
  }
  func.func @transform_8(%arg0: i32, %arg1: i32) -> (i32, i32) {
    %c0_i32 = arith.constant 0 : i32
    %c0_i32_0 = arith.constant 0 : i32
    %c0_i32_1 = arith.constant 0 : i32
    return %c0_i32, %c0_i32_0 : i32, i32
  }
  func.func @transform_9(%arg0: i32, %arg1: i32) -> (i32, i32) {
    %c0_i32 = arith.constant 0 : i32
    %c0_i32_0 = arith.constant 0 : i32
    %c0_i32_1 = arith.constant 0 : i32
    return %c0_i32, %c0_i32_0 : i32, i32
  }
  func.func @transform_10(%arg0: i32, %arg1: i32) -> (i32, i32) {
    %c0_i32 = arith.constant 0 : i32
    %c0_i32_0 = arith.constant 0 : i32
    %c0_i32_1 = arith.constant 0 : i32
    return %c0_i32, %c0_i32_0 : i32, i32
  }
  func.func @transform_11(%arg0: i32, %arg1: i32) -> (i32, i32) {
    %c0_i32 = arith.constant 0 : i32
    %c0_i32_0 = arith.constant 0 : i32
    %c0_i32_1 = arith.constant 0 : i32
    return %c0_i32, %c0_i32_0 : i32, i32
  }
  func.func @transform_12(%arg0: i32, %arg1: i32) -> (i32, i32) {
    %c0_i32 = arith.constant 0 : i32
    %c0_i32_0 = arith.constant 0 : i32
    %c0_i32_1 = arith.constant 0 : i32
    return %c0_i32, %c0_i32_0 : i32, i32
  }
  func.func @transform_13(%arg0: i32, %arg1: i32) -> (i32, i32) {
    %c0_i32 = arith.constant 0 : i32
    %c0_i32_0 = arith.constant 0 : i32
    %c0_i32_1 = arith.constant 0 : i32
    return %c0_i32, %c0_i32_0 : i32, i32
  }
  func.func @transform_14(%arg0: i32, %arg1: i32) -> (i32, i32) {
    %c0_i32 = arith.constant 0 : i32
    %c0_i32_0 = arith.constant 0 : i32
    %c0_i32_1 = arith.constant 0 : i32
    return %c0_i32, %c0_i32_0 : i32, i32
  }
  func.func @transform_15(%arg0: i32, %arg1: i32) -> (i32, i32, i32) {
    %c0_i32 = arith.constant 0 : i32
    %c0_i32_0 = arith.constant 0 : i32
    return %arg0, %arg1, %c0_i32 : i32, i32, i32
  }
}

</mosaic_0001>

<llo_original>
// kernel: tpu_custom_call.1
$region0: #{tpu_custom_call.1}
  #allocation0 [shape = 'u32[]', space=smem, size = 0x4, offset = 0x4, fixed_abs, tag = 'smem constant byte address 0x4 - core index']
  #allocation1 [shape = 'u32[144,128]{1,0:T(1,128)}', space=vmem, size = 0x12000, scoped, tag = 'internal scratch']
  #allocation2 [shape = 'f32[4,16,8]{2,1,0:T(8,128)}', space=vmem, size = 0x8000, scoped, tag = 'scratch operand']
  #allocation3 [shape = 'f32[4,16,8]{2,1,0:T(8,128)}', space=vmem, size = 0x8000, scoped, tag = 'scratch operand']
  #allocation4 [shape = 'f32[4,8,8]{2,1,0:T(8,128)}', space=vmem, size = 0x4000, scoped, tag = 'scratch operand']
  %s0 = inlined_call_operand.vmem [shape: f32[2,16,32], index: 0, kind: input, shape index: {}]
  %s1 = inlined_call_operand.vmem [shape: f32[32,32], index: 1, kind: input, shape index: {}]
  %s2 = inlined_call_operand.vmem [shape: f32[1,32], index: 2, kind: input, shape index: {}]
  %s3 = inlined_call_operand.vmem [shape: f32[32,64], index: 3, kind: input, shape index: {}]
  %s4 = inlined_call_operand.vmem [shape: f32[1,64], index: 4, kind: input, shape index: {}]
  %s5 = inlined_call_operand.vmem [shape: f32[4,8,32], index: 5, kind: input, shape index: {}]
  %s6 = inlined_call_operand.vmem [shape: f32[1,32], index: 6, kind: input, shape index: {}]
  %s7 = inlined_call_operand.vmem [shape: f32[32,128], index: 7, kind: input, shape index: {}]
  %s8 = inlined_call_operand.vmem [shape: f32[1,128], index: 8, kind: input, shape index: {}]
  %s9 = inlined_call_operand.vmem [shape: f32[128,32], index: 9, kind: input, shape index: {}]
  %s10 = inlined_call_operand.vmem [shape: f32[1,32], index: 10, kind: input, shape index: {}]
  %s11 = inlined_call_operand.vmem [shape: f32[1,32], index: 11, kind: input, shape index: {}]
  %s12 = inlined_call_operand.vmem [shape: f32[1,32], index: 12, kind: input, shape index: {}]
  %s13 = inlined_call_operand.vmem [shape: f32[1,32], index: 13, kind: input, shape index: {}]
  %s14 = inlined_call_operand.vmem [shape: f32[1,32], index: 14, kind: input, shape index: {}]
  %s15 = inlined_call_operand.hbm [shape: f32[2,16,32], index: 15, kind: output, shape index: {}]
  %s16 = sld [smem:[#allocation0]]
  $region111: #{tpu_custom_call.1} parent=0
    _
  %s18 = ssub.s32 1, %s16
  %s19 = scalar_select 0, %s18, %s16
  $region1: #{tpu_custom_call.1} parent=0
    #allocation5 [shape = 'u8[8192]{0}', space=vmem, size = 0x2000, scoped, tag = 'output window, operand 0']
    #allocation6 [shape = 's32[2]{0}', space=sflag, size = 0x8, scoped, tag = 'scoped memory for tpu_custom_call.1']
    %20 = vsyncpa [#allocation6], 0
    %s21 = scalar_lea.sflag [#allocation6], 1
    %22 = vsyncpa %s21, 0
    loop: start=0, step=1, limit=6
    $region2: #{tpu_custom_call.1} parent=1 // loop_pre_header
      _
    $region3: #{tpu_custom_call.1} parent=1 // loop_header
      %s24 = sphi 0, %s28
      %p25 = scmp.ge.s32.totalorder %s24, 6
      %s31 = sphi 0, %s43
      %s32 = sphi 0, %s39
      %s33 = sphi 0, %s31
      %s34 = sphi 0, %s32
      %s35 = sphi 0, %s33
      %s36 = sphi 0, %s34
      %s46 = sphi 0, %s48
      %s49 = sphi 0, %s46
      %s50 = sphi 0, %s49
      %s66 = sphi 0, %s50
      %s70 = sphi 0, %s70
      %s72 = sphi 0, %s70
      %s73 = sphi 0, %s72
      %s87 = sphi 0, %s73
      %s91 = sphi 0, %s91
      %s93 = sphi 0, %s91
      %s94 = sphi 0, %s93
      %s108 = sphi 0, %s94
      %s112 = sphi 0, %s112
      %s114 = sphi 0, %s112
      %s115 = sphi 0, %s114
      %s129 = sphi 0, %s115
      %s133 = sphi 0, %s133
      %s135 = sphi 0, %s133
      %s136 = sphi 0, %s135
      %s150 = sphi 0, %s136
      %s154 = sphi 0, %s154
      %s156 = sphi 0, %s154
      %s157 = sphi 0, %s156
      %s171 = sphi 0, %s157
      %s175 = sphi 0, %s175
      %s177 = sphi 0, %s175
      %s178 = sphi 0, %s177
      %s192 = sphi 0, %s178
      %s196 = sphi 0, %s196
      %s198 = sphi 0, %s196
      %s199 = sphi 0, %s198
      %s213 = sphi 0, %s199
      %s217 = sphi 0, %s217
      %s219 = sphi 0, %s217
      %s220 = sphi 0, %s219
      %s234 = sphi 0, %s220
      %s238 = sphi 0, %s238
      %s240 = sphi 0, %s238
      %s241 = sphi 0, %s240
      %s255 = sphi 0, %s241
      %s259 = sphi 0, %s259
      %s261 = sphi 0, %s259
      %s262 = sphi 0, %s261
      %s276 = sphi 0, %s262
      %s280 = sphi 0, %s280
      %s282 = sphi 0, %s280
      %s283 = sphi 0, %s282
      %s297 = sphi 0, %s283
      %s301 = sphi 0, %s301
      %s303 = sphi 0, %s301
      %s304 = sphi 0, %s303
      %s318 = sphi 0, %s304
      %s322 = sphi 0, %s322
      %s324 = sphi 0, %s322
      %s325 = sphi 0, %s324
      %s339 = sphi 0, %s325
      %s343 = sphi 0, %s343
      %s345 = sphi 0, %s343
      %s346 = sphi 0, %s345
      %s360 = sphi 0, %s346
      %s368 = sphi 0, %s370
      %s371 = sphi 0, %s368
      %s372 = sphi 0, %s371
      %s388 = sphi 0, %s372
    $region4: #{tpu_custom_call.1} parent=1 // loop_header_branch
      %27 = sbr.rel (%p25) target = $region8
    $region5: #{tpu_custom_call.1} parent=1 // loop_body
      %s29 = ssub.s32 %s24, 1
      %s30 = ssub.s32 %s24, 2
      %s37 = sadd.s32 1, %s32
      %p38 = scmp.ge.s32.totalorder %s37, 2
      %s39 = scalar_select %p38, 0, %s37
      %s40 = sadd.s32 1, %s31
      %s41 = scalar_select %p38, %s40, %s31
      %p42 = scmp.ge.s32.totalorder %s41, 2
      %s43 = scalar_select %p42, 0, %s41
      %s44 = ssub.s32 %s31, %s43
      %p45 = scmp.eq.s32.totalorder %s44, 0
      %s47 = sadd.s32 %s46, 1
      %s48 = scalar_select %p45, %s46, %s47
      %p51 = pneg %p45
      %p52 = scmp.eq.s32.totalorder %s24, 3
      %p53 = por %p51, %p52
      %p54 = scmp.ne.s32.totalorder %s46, %s49
      %p55 = scmp.eq.s32.totalorder %s24, 0
      %p56 = por %p54, %p55
      %p57 = scmp.ne.s32.totalorder %s46, %s49
      %p58 = scmp.eq.s32.totalorder %s29, 3
      %p59 = por %p57, %p58
      %p60 = scmp.ne.s32.totalorder %s49, %s50
      %p61 = scmp.eq.s32.totalorder %s29, 0
      %p62 = por %p60, %p61
      %p63 = scmp.ne.s32.totalorder %s49, %s50
      %p64 = scmp.eq.s32.totalorder %s30, 3
      %p65 = por %p63, %p64
      %p67 = scmp.ne.s32.totalorder %s50, %s66
      %p68 = scmp.eq.s32.totalorder %s30, 0
      %p69 = por %p67, %p68
      %s71 = sadd.s32 %s70, 1
      %p74 = scmp.eq.s32.totalorder %s24, 3
      %p75 = scmp.ne.s32.totalorder %s70, %s72
      %p76 = scmp.eq.s32.totalorder %s24, 0
      %p77 = por %p75, %p76
      %p78 = scmp.ne.s32.totalorder %s70, %s72
      %p79 = scmp.eq.s32.totalorder %s29, 3
      %p80 = por %p78, %p79
      %p81 = scmp.ne.s32.totalorder %s72, %s73
      %p82 = scmp.eq.s32.totalorder %s29, 0
      %p83 = por %p81, %p82
      %p84 = scmp.ne.s32.totalorder %s72, %s73
      %p85 = scmp.eq.s32.totalorder %s30, 3
      %p86 = por %p84, %p85
      %p88 = scmp.ne.s32.totalorder %s73, %s87
      %p89 = scmp.eq.s32.totalorder %s30, 0
      %p90 = por %p88, %p89
      %s92 = sadd.s32 %s91, 1
      %p95 = scmp.eq.s32.totalorder %s24, 3
      %p96 = scmp.ne.s32.totalorder %s91, %s93
      %p97 = scmp.eq.s32.totalorder %s24, 0
      %p98 = por %p96, %p97
      %p99 = scmp.ne.s32.totalorder %s91, %s93
      %p100 = scmp.eq.s32.totalorder %s29, 3
      %p101 = por %p99, %p100
      %p102 = scmp.ne.s32.totalorder %s93, %s94
      %p103 = scmp.eq.s32.totalorder %s29, 0
      %p104 = por %p102, %p103
      %p105 = scmp.ne.s32.totalorder %s93, %s94
      %p106 = scmp.eq.s32.totalorder %s30, 3
      %p107 = por %p105, %p106
      %p109 = scmp.ne.s32.totalorder %s94, %s108
      %p110 = scmp.eq.s32.totalorder %s30, 0
      %p111 = por %p109, %p110
      %s113 = sadd.s32 %s112, 1
      %p116 = scmp.eq.s32.totalorder %s24, 3
      %p117 = scmp.ne.s32.totalorder %s112, %s114
      %p118 = scmp.eq.s32.totalorder %s24, 0
      %p119 = por %p117, %p118
      %p120 = scmp.ne.s32.totalorder %s112, %s114
      %p121 = scmp.eq.s32.totalorder %s29, 3
      %p122 = por %p120, %p121
      %p123 = scmp.ne.s32.totalorder %s114, %s115
      %p124 = scmp.eq.s32.totalorder %s29, 0
      %p125 = por %p123, %p124
      %p126 = scmp.ne.s32.totalorder %s114, %s115
      %p127 = scmp.eq.s32.totalorder %s30, 3
      %p128 = por %p126, %p127
      %p130 = scmp.ne.s32.totalorder %s115, %s129
      %p131 = scmp.eq.s32.totalorder %s30, 0
      %p132 = por %p130, %p131
      %s134 = sadd.s32 %s133, 1
      %p137 = scmp.eq.s32.totalorder %s24, 3
      %p138 = scmp.ne.s32.totalorder %s133, %s135
      %p139 = scmp.eq.s32.totalorder %s24, 0
      %p140 = por %p138, %p139
      %p141 = scmp.ne.s32.totalorder %s133, %s135
      %p142 = scmp.eq.s32.totalorder %s29, 3
      %p143 = por %p141, %p142
      %p144 = scmp.ne.s32.totalorder %s135, %s136
      %p145 = scmp.eq.s32.totalorder %s29, 0
      %p146 = por %p144, %p145
      %p147 = scmp.ne.s32.totalorder %s135, %s136
      %p148 = scmp.eq.s32.totalorder %s30, 3
      %p149 = por %p147, %p148
      %p151 = scmp.ne.s32.totalorder %s136, %s150
      %p152 = scmp.eq.s32.totalorder %s30, 0
      %p153 = por %p151, %p152
      %s155 = sadd.s32 %s154, 1
      %p158 = scmp.eq.s32.totalorder %s24, 3
      %p159 = scmp.ne.s32.totalorder %s154, %s156
      %p160 = scmp.eq.s32.totalorder %s24, 0
      %p161 = por %p159, %p160
      %p162 = scmp.ne.s32.totalorder %s154, %s156
      %p163 = scmp.eq.s32.totalorder %s29, 3
      %p164 = por %p162, %p163
      %p165 = scmp.ne.s32.totalorder %s156, %s157
      %p166 = scmp.eq.s32.totalorder %s29, 0
      %p167 = por %p165, %p166
      %p168 = scmp.ne.s32.totalorder %s156, %s157
      %p169 = scmp.eq.s32.totalorder %s30, 3
      %p170 = por %p168, %p169
      %p172 = scmp.ne.s32.totalorder %s157, %s171
      %p173 = scmp.eq.s32.totalorder %s30, 0
      %p174 = por %p172, %p173
      %s176 = sadd.s32 %s175, 1
      %p179 = scmp.eq.s32.totalorder %s24, 3
      %p180 = scmp.ne.s32.totalorder %s175, %s177
      %p181 = scmp.eq.s32.totalorder %s24, 0
      %p182 = por %p180, %p181
      %p183 = scmp.ne.s32.totalorder %s175, %s177
      %p184 = scmp.eq.s32.totalorder %s29, 3
      %p185 = por %p183, %p184
      %p186 = scmp.ne.s32.totalorder %s177, %s178
      %p187 = scmp.eq.s32.totalorder %s29, 0
      %p188 = por %p186, %p187
      %p189 = scmp.ne.s32.totalorder %s177, %s178
      %p190 = scmp.eq.s32.totalorder %s30, 3
      %p191 = por %p189, %p190
      %p193 = scmp.ne.s32.totalorder %s178, %s192
      %p194 = scmp.eq.s32.totalorder %s30, 0
      %p195 = por %p193, %p194
      %s197 = sadd.s32 %s196, 1
      %p200 = scmp.eq.s32.totalorder %s24, 3
      %p201 = scmp.ne.s32.totalorder %s196, %s198
      %p202 = scmp.eq.s32.totalorder %s24, 0
      %p203 = por %p201, %p202
      %p204 = scmp.ne.s32.totalorder %s196, %s198
      %p205 = scmp.eq.s32.totalorder %s29, 3
      %p206 = por %p204, %p205
      %p207 = scmp.ne.s32.totalorder %s198, %s199
      %p208 = scmp.eq.s32.totalorder %s29, 0
      %p209 = por %p207, %p208
      %p210 = scmp.ne.s32.totalorder %s198, %s199
      %p211 = scmp.eq.s32.totalorder %s30, 3
      %p212 = por %p210, %p211
      %p214 = scmp.ne.s32.totalorder %s199, %s213
      %p215 = scmp.eq.s32.totalorder %s30, 0
      %p216 = por %p214, %p215
      %s218 = sadd.s32 %s217, 1
      %p221 = scmp.eq.s32.totalorder %s24, 3
      %p222 = scmp.ne.s32.totalorder %s217, %s219
      %p223 = scmp.eq.s32.totalorder %s24, 0
      %p224 = por %p222, %p223
      %p225 = scmp.ne.s32.totalorder %s217, %s219
      %p226 = scmp.eq.s32.totalorder %s29, 3
      %p227 = por %p225, %p226
      %p228 = scmp.ne.s32.totalorder %s219, %s220
      %p229 = scmp.eq.s32.totalorder %s29, 0
      %p230 = por %p228, %p229
      %p231 = scmp.ne.s32.totalorder %s219, %s220
      %p232 = scmp.eq.s32.totalorder %s30, 3
      %p233 = por %p231, %p232
      %p235 = scmp.ne.s32.totalorder %s220, %s234
      %p236 = scmp.eq.s32.totalorder %s30, 0
      %p237 = por %p235, %p236
      %s239 = sadd.s32 %s238, 1
      %p242 = scmp.eq.s32.totalorder %s24, 3
      %p243 = scmp.ne.s32.totalorder %s238, %s240
      %p244 = scmp.eq.s32.totalorder %s24, 0
      %p245 = por %p243, %p244
      %p246 = scmp.ne.s32.totalorder %s238, %s240
      %p247 = scmp.eq.s32.totalorder %s29, 3
      %p248 = por %p246, %p247
      %p249 = scmp.ne.s32.totalorder %s240, %s241
      %p250 = scmp.eq.s32.totalorder %s29, 0
      %p251 = por %p249, %p250
      %p252 = scmp.ne.s32.totalorder %s240, %s241
      %p253 = scmp.eq.s32.totalorder %s30, 3
      %p254 = por %p252, %p253
      %p256 = scmp.ne.s32.totalorder %s241, %s255
      %p257 = scmp.eq.s32.totalorder %s30, 0
      %p258 = por %p256, %p257
      %s260 = sadd.s32 %s259, 1
      %p263 = scmp.eq.s32.totalorder %s24, 3
      %p264 = scmp.ne.s32.totalorder %s259, %s261
      %p265 = scmp.eq.s32.totalorder %s24, 0
      %p266 = por %p264, %p265
      %p267 = scmp.ne.s32.totalorder %s259, %s261
      %p268 = scmp.eq.s32.totalorder %s29, 3
      %p269 = por %p267, %p268
      %p270 = scmp.ne.s32.totalorder %s261, %s262
      %p271 = scmp.eq.s32.totalorder %s29, 0
      %p272 = por %p270, %p271
      %p273 = scmp.ne.s32.totalorder %s261, %s262
      %p274 = scmp.eq.s32.totalorder %s30, 3
      %p275 = por %p273, %p274
      %p277 = scmp.ne.s32.totalorder %s262, %s276
      %p278 = scmp.eq.s32.totalorder %s30, 0
      %p279 = por %p277, %p278
      %s281 = sadd.s32 %s280, 1
      %p284 = scmp.eq.s32.totalorder %s24, 3
      %p285 = scmp.ne.s32.totalorder %s280, %s282
      %p286 = scmp.eq.s32.totalorder %s24, 0
      %p287 = por %p285, %p286
      %p288 = scmp.ne.s32.totalorder %s280, %s282
      %p289 = scmp.eq.s32.totalorder %s29, 3
      %p290 = por %p288, %p289
      %p291 = scmp.ne.s32.totalorder %s282, %s283
      %p292 = scmp.eq.s32.totalorder %s29, 0
      %p293 = por %p291, %p292
      %p294 = scmp.ne.s32.totalorder %s282, %s283
      %p295 = scmp.eq.s32.totalorder %s30, 3
      %p296 = por %p294, %p295
      %p298 = scmp.ne.s32.totalorder %s283, %s297
      %p299 = scmp.eq.s32.totalorder %s30, 0
      %p300 = por %p298, %p299
      %s302 = sadd.s32 %s301, 1
      %p305 = scmp.eq.s32.totalorder %s24, 3
      %p306 = scmp.ne.s32.totalorder %s301, %s303
      %p307 = scmp.eq.s32.totalorder %s24, 0
      %p308 = por %p306, %p307
      %p309 = scmp.ne.s32.totalorder %s301, %s303
      %p310 = scmp.eq.s32.totalorder %s29, 3
      %p311 = por %p309, %p310
      %p312 = scmp.ne.s32.totalorder %s303, %s304
      %p313 = scmp.eq.s32.totalorder %s29, 0
      %p314 = por %p312, %p313
      %p315 = scmp.ne.s32.totalorder %s303, %s304
      %p316 = scmp.eq.s32.totalorder %s30, 3
      %p317 = por %p315, %p316
      %p319 = scmp.ne.s32.totalorder %s304, %s318
      %p320 = scmp.eq.s32.totalorder %s30, 0
      %p321 = por %p319, %p320
      %s323 = sadd.s32 %s322, 1
      %p326 = scmp.eq.s32.totalorder %s24, 3
      %p327 = scmp.ne.s32.totalorder %s322, %s324
      %p328 = scmp.eq.s32.totalorder %s24, 0
      %p329 = por %p327, %p328
      %p330 = scmp.ne.s32.totalorder %s322, %s324
      %p331 = scmp.eq.s32.totalorder %s29, 3
      %p332 = por %p330, %p331
      %p333 = scmp.ne.s32.totalorder %s324, %s325
      %p334 = scmp.eq.s32.totalorder %s29, 0
      %p335 = por %p333, %p334
      %p336 = scmp.ne.s32.totalorder %s324, %s325
      %p337 = scmp.eq.s32.totalorder %s30, 3
      %p338 = por %p336, %p337
      %p340 = scmp.ne.s32.totalorder %s325, %s339
      %p341 = scmp.eq.s32.totalorder %s30, 0
      %p342 = por %p340, %p341
      %s344 = sadd.s32 %s343, 1
      %p347 = scmp.eq.s32.totalorder %s24, 3
      %p348 = scmp.ne.s32.totalorder %s343, %s345
      %p349 = scmp.eq.s32.totalorder %s24, 0
      %p350 = por %p348, %p349
      %p351 = scmp.ne.s32.totalorder %s343, %s345
      %p352 = scmp.eq.s32.totalorder %s29, 3
      %p353 = por %p351, %p352
      %p354 = scmp.ne.s32.totalorder %s345, %s346
      %p355 = scmp.eq.s32.totalorder %s29, 0
      %p356 = por %p354, %p355
      %p357 = scmp.ne.s32.totalorder %s345, %s346
      %p358 = scmp.eq.s32.totalorder %s30, 3
      %p359 = por %p357, %p358
      %p361 = scmp.ne.s32.totalorder %s346, %s360
      %p362 = scmp.eq.s32.totalorder %s30, 0
      %p363 = por %p361, %p362
      %s364 = ssub.s32 %s31, %s43
      %s365 = ssub.s32 %s32, %s39
      %s366 = sor.u32 %s364, %s365
      %p367 = scmp.eq.s32.totalorder %s366, 0
      %s369 = sadd.s32 %s368, 1
      %s370 = scalar_select %p367, %s368, %s369
      %p373 = pneg %p367
      %p374 = scmp.eq.s32.totalorder %s24, 3
      %p375 = por %p373, %p374
      %p376 = scmp.ne.s32.totalorder %s368, %s371
      %p377 = scmp.eq.s32.totalorder %s24, 0
      %p378 = por %p376, %p377
      %p379 = scmp.ne.s32.totalorder %s368, %s371
      %p380 = scmp.eq.s32.totalorder %s29, 3
      %p381 = por %p379, %p380
      %p382 = scmp.ne.s32.totalorder %s371, %s372
      %p383 = scmp.eq.s32.totalorder %s29, 0
      %p384 = por %p382, %p383
      %p385 = scmp.ne.s32.totalorder %s371, %s372
      %p386 = scmp.eq.s32.totalorder %s30, 3
      %p387 = por %p385, %p386
      %p389 = scmp.ne.s32.totalorder %s372, %s388
      %p390 = scmp.eq.s32.totalorder %s30, 0
      %p391 = por %p389, %p390
      %p392 = scmp.le.s32.totalorder 1, %s24
      %p393 = scmp.lt.s32.totalorder %s24, 5
      %p394 = pnand %p392, %p393
      %p395 = pneg %p394
      // Predicated region
      $region9: #{tpu_custom_call.1} parent=5 // pred_check
        _
      $region10: #{tpu_custom_call.1} parent=5 // pred_check_branch
        %397 = sbr.rel (%p394) target = $region12
      $region11: #{tpu_custom_call.1} parent=5 // pred_region
        %s398 = ssub.s32 %s24, 1
        // Predicated region
        $region13: #{tpu_custom_call.1} parent=11 // pred_check
          %p399 = pneg %p83
        $region14: #{tpu_custom_call.1} parent=11 // pred_check_branch
          %401 = sbr.rel (%p399) target = $region16
        $region15: #{tpu_custom_call.1} parent=11 // pred_region
          _
        $region16: #{tpu_custom_call.1} parent=11 // pred_fallthru
          _
        // Predicated region
        $region17: #{tpu_custom_call.1} parent=11 // pred_check
          %p402 = pneg %p104
        $region18: #{tpu_custom_call.1} parent=11 // pred_check_branch
          %404 = sbr.rel (%p402) target = $region20
        $region19: #{tpu_custom_call.1} parent=11 // pred_region
          _
        $region20: #{tpu_custom_call.1} parent=11 // pred_fallthru
          _
        // Predicated region
        $region21: #{tpu_custom_call.1} parent=11 // pred_check
          %p405 = pneg %p125
        $region22: #{tpu_custom_call.1} parent=11 // pred_check_branch
          %407 = sbr.rel (%p405) target = $region24
        $region23: #{tpu_custom_call.1} parent=11 // pred_region
          _
        $region24: #{tpu_custom_call.1} parent=11 // pred_fallthru
          _
        // Predicated region
        $region25: #{tpu_custom_call.1} parent=11 // pred_check
          %p408 = pneg %p146
        $region26: #{tpu_custom_call.1} parent=11 // pred_check_branch
          %410 = sbr.rel (%p408) target = $region28
        $region27: #{tpu_custom_call.1} parent=11 // pred_region
          _
        $region28: #{tpu_custom_call.1} parent=11 // pred_fallthru
          _
        // Predicated region
        $region29: #{tpu_custom_call.1} parent=11 // pred_check
          %p411 = pneg %p167
        $region30: #{tpu_custom_call.1} parent=11 // pred_check_branch
          %413 = sbr.rel (%p411) target = $region32
        $region31: #{tpu_custom_call.1} parent=11 // pred_region
          _
        $region32: #{tpu_custom_call.1} parent=11 // pred_fallthru
          _
        // Predicated region
        $region33: #{tpu_custom_call.1} parent=11 // pred_check
          %p414 = pneg %p188
        $region34: #{tpu_custom_call.1} parent=11 // pred_check_branch
          %416 = sbr.rel (%p414) target = $region36
        $region35: #{tpu_custom_call.1} parent=11 // pred_region
          _
        $region36: #{tpu_custom_call.1} parent=11 // pred_fallthru
          _
        // Predicated region
        $region37: #{tpu_custom_call.1} parent=11 // pred_check
          %p417 = pneg %p209
        $region38: #{tpu_custom_call.1} parent=11 // pred_check_branch
          %419 = sbr.rel (%p417) target = $region40
        $region39: #{tpu_custom_call.1} parent=11 // pred_region
          _
        $region40: #{tpu_custom_call.1} parent=11 // pred_fallthru
          _
        // Predicated region
        $region41: #{tpu_custom_call.1} parent=11 // pred_check
          %p420 = pneg %p230
        $region42: #{tpu_custom_call.1} parent=11 // pred_check_branch
          %422 = sbr.rel (%p420) target = $region44
        $region43: #{tpu_custom_call.1} parent=11 // pred_region
          _
        $region44: #{tpu_custom_call.1} parent=11 // pred_fallthru
          _
        // Predicated region
        $region45: #{tpu_custom_call.1} parent=11 // pred_check
          %p423 = pneg %p251
        $region46: #{tpu_custom_call.1} parent=11 // pred_check_branch
          %425 = sbr.rel (%p423) target = $region48
        $region47: #{tpu_custom_call.1} parent=11 // pred_region
          _
        $region48: #{tpu_custom_call.1} parent=11 // pred_fallthru
          _
        // Predicated region
        $region49: #{tpu_custom_call.1} parent=11 // pred_check
          %p426 = pneg %p272
        $region50: #{tpu_custom_call.1} parent=11 // pred_check_branch
          %428 = sbr.rel (%p426) target = $region52
        $region51: #{tpu_custom_call.1} parent=11 // pred_region
          _
        $region52: #{tpu_custom_call.1} parent=11 // pred_fallthru
          _
        // Predicated region
        $region53: #{tpu_custom_call.1} parent=11 // pred_check
          %p429 = pneg %p293
        $region54: #{tpu_custom_call.1} parent=11 // pred_check_branch
          %431 = sbr.rel (%p429) target = $region56
        $region55: #{tpu_custom_call.1} parent=11 // pred_region
          _
        $region56: #{tpu_custom_call.1} parent=11 // pred_fallthru
          _
        // Predicated region
        $region57: #{tpu_custom_call.1} parent=11 // pred_check
          %p432 = pneg %p314
        $region58: #{tpu_custom_call.1} parent=11 // pred_check_branch
          %434 = sbr.rel (%p432) target = $region60
        $region59: #{tpu_custom_call.1} parent=11 // pred_region
          _
        $region60: #{tpu_custom_call.1} parent=11 // pred_fallthru
          _
        // Predicated region
        $region61: #{tpu_custom_call.1} parent=11 // pred_check
          %p435 = pneg %p335
        $region62: #{tpu_custom_call.1} parent=11 // pred_check_branch
          %437 = sbr.rel (%p435) target = $region64
        $region63: #{tpu_custom_call.1} parent=11 // pred_region
          _
        $region64: #{tpu_custom_call.1} parent=11 // pred_fallthru
          _
        // Predicated region
        $region65: #{tpu_custom_call.1} parent=11 // pred_check
          %p438 = pneg %p356
        $region66: #{tpu_custom_call.1} parent=11 // pred_check_branch
          %440 = sbr.rel (%p438) target = $region68
        $region67: #{tpu_custom_call.1} parent=11 // pred_region
          _
        $region68: #{tpu_custom_call.1} parent=11 // pred_fallthru
          _
      $region12: #{tpu_custom_call.1} parent=5 // pred_fallthru
        _
      %p441 = scmp.lt.s32.totalorder %s24, 4
      // Predicated region
      $region69: #{tpu_custom_call.1} parent=5 // pred_check
        %p442 = pneg %p441
      $region70: #{tpu_custom_call.1} parent=5 // pred_check_branch
        %444 = sbr.rel (%p442) target = $region72
      $region71: #{tpu_custom_call.1} parent=5 // pred_region
        // Predicated region
        $region73: #{tpu_custom_call.1} parent=71 // pred_check
          %p445 = pneg %p56
        $region74: #{tpu_custom_call.1} parent=71 // pred_check_branch
          %447 = sbr.rel (%p445) target = $region76
        $region75: #{tpu_custom_call.1} parent=71 // pred_region
          %p448 = scmp.lt.s32.totalorder %s31, 1
          %s449 = scalar_select %p448, %s31, 1
          %s450 = smul.addr %s449, 2
          %s451 = smul.addr %s450, 8
          %s452 = scalar_lea.vmem %s0, %s451
        $region76: #{tpu_custom_call.1} parent=71 // pred_fallthru
          _
      $region72: #{tpu_custom_call.1} parent=5 // pred_fallthru
        _
      %p453 = scmp.le.s32.totalorder 1, %s24
      %p454 = scmp.lt.s32.totalorder %s24, 5
      %p455 = pnand %p453, %p454
      %p456 = pneg %p455
      // Predicated region
      $region77: #{tpu_custom_call.1} parent=5 // pred_check
        _
      $region78: #{tpu_custom_call.1} parent=5 // pred_check_branch
        %458 = sbr.rel (%p455) target = $region80
      $region79: #{tpu_custom_call.1} parent=5 // pred_region
        %s459 = ssub.s32 %s24, 1
        %p460 = scmp.lt.s32.totalorder %s33, 1
        %s461 = scalar_select %p460, %s33, 1
        %s462 = smul.addr %s461, 2
        %s463 = smul.addr %s462, 8
        %s464 = scalar_lea.vmem %s0, %s463
        %p465 = pneg %p62
        %p466 = pneg %p59
        %p467 = pneg %p83
        %p468 = pneg %p80
        %p469 = pneg %p104
        %p470 = pneg %p101
        %p471 = pneg %p125
        %p472 = pneg %p122
        %p473 = pneg %p146
        %p474 = pneg %p143
        %p475 = pneg %p167
        %p476 = pneg %p164
        %p477 = pneg %p188
        %p478 = pneg %p185
        %p479 = pneg %p209
        %p480 = pneg %p206
        %p481 = pneg %p230
        %p482 = pneg %p227
        %p483 = pneg %p251
        %p484 = pneg %p248
        %p485 = pneg %p272
        %p486 = pneg %p269
        %p487 = pneg %p293
        %p488 = pneg %p290
        %p489 = pneg %p314
        %p490 = pneg %p311
        %p491 = pneg %p335
        %p492 = pneg %p332
        %p493 = pneg %p356
        %p494 = pneg %p353
        %p495 = pneg %p384
        %p496 = pneg %p381
        %s497 = sand.u32 %s371, 1
        %s498 = scalar_lea.sflag [#allocation6], %s497
        %s499 = sand.u32 %s371, 1
        %s500 = smul.addr %s499, 8
        %s501 = scalar_lea.vmem [#allocation5], %s500
        %p502 = scmp.lt.s32.totalorder %s33, 1
        %s503 = scalar_select %p502, %s33, 1
        %s504 = smul.addr %s503, 2
        %s505 = smul.addr %s504, 8
        %s506 = scalar_lea.vmem %s0, %s505
        %v507 = vld [vmem:[%s11] sm:$0x1]
        %v508 = vld [vmem:[%s12] sm:$0x1]
        %p509 = scmp.eq.s32.totalorder %s34, 0
        // Predicated region
        $region81: #{tpu_custom_call.1} parent=79 // pred_check
          %p510 = pneg %p509
        $region82: #{tpu_custom_call.1} parent=79 // pred_check_branch
          %512 = sbr.rel (%p510) target = $region84
        $region83: #{tpu_custom_call.1} parent=79 // pred_region
          loop: start=0, step=1, limit=2
          $region85: #{tpu_custom_call.1} parent=83 // loop_pre_header
            _
          $region86: #{tpu_custom_call.1} parent=83 // loop_header
            %s514 = sphi 0, %s518
            %p515 = scmp.ge.s32.totalorder %s514, 2
          $region87: #{tpu_custom_call.1} parent=83 // loop_header_branch
            %517 = sbr.rel (%p515) target = $region91
          $region88: #{tpu_custom_call.1} parent=83 // loop_body
            %s519 = smul.u32 %s514, 8
            %s520 = scalar_lea.vmem %s506, %s519
            %v521 = vld [vmem:[%s520] sm:$0xff]
            %vm522 = vcmask 261120
            %v523 = vsel %vm522, %v521, 0.0
            %524 = vadd.xlane.f32.xlu0 %v523
            %v525 = vpop.xlane.xlu0 %524
            %v526 = vrcp.pop 32.0
            %v527 = vmul.f32 %v525, %v526
            %v528 = vsub.f32 %v521, %v527
            %v529 = vmul.f32 %v528, %v528
            %v530 = vsel %vm522, %v529, 0.0
            %531 = vadd.xlane.f32.xlu0 %v530
            %v532 = vpop.xlane.xlu0 %531
            %v533 = vmul.f32 %v532, %v526
            %v534 = vadd.f32 %v533, 1e-05
            %v535 = vrsqrt.pop %v534
            %v536 = vmul.f32 %v528, %v535
            %v538 = vlaneseq
            %v539 = vshrl.u32 %v538, 7
            %v540 = vsub.s32 0, %v539
            %v541 = vrot.slane %v507, %v540
            %v543 = vmul.f32 %v536, %v541
            %v545 = vlaneseq
            %v546 = vshrl.u32 %v545, 7
            %v547 = vsub.s32 0, %v546
            %v548 = vrot.slane %v508, %v547
            %v550 = vadd.f32 %v543, %v548
            %v551 = vld [vmem:[%s3] sm:$0xff]
            %v552 = vld [vmem:[%s3 + $0x8] sm:$0xff]
            %v553 = vld [vmem:[%s3 + $0x10] sm:$0xff]
            %v554 = vld [vmem:[%s3 + $0x18] sm:$0xff]
            %v555 = vld [vmem:[%s4] sm:$0x1]
            %v557 = vlaneseq
            %v558 = vshrl.u32 %v557, 7
            %v559 = vsub.s32 0, %v558
            %v560 = vrot.slane %v555, %v559
            %v563 = vsel %vm522, %v550, 0
            %565 = vmatprep.subr.mxu0 0.0
            %566 = vmatpush1.msra.mxu0 0.0
            %567 = vmatprep.subr.mxu0 0.0
            %568 = vmatpush1.msra.mxu0 0.0
            %569 = vmatprep.subr.mxu0 0.0
            %570 = vmatpush1.msra.mxu0 0.0
            %571 = vmatprep.subr.mxu0 0.0
            %572 = vmatpush1.msra.mxu0 0.0
            %573 = vmatprep.subr.mxu0 0.0
            %574 = vmatpush1.msra.mxu0 0.0
            %575 = vmatprep.subr.mxu0 0.0
            %576 = vmatpush1.msra.mxu0 0.0
            %577 = vmatprep.subr.mxu0 0.0
            %578 = vmatpush1.msra.mxu0 0.0
            %579 = vmatprep.subr.mxu0 0.0
            %580 = vmatpush1.msra.mxu0 0.0
            %581 = vmatprep.subr.mxu0 0.0
            %582 = vmatpush1.msra.mxu0 0.0
            %583 = vmatprep.subr.mxu0 0.0
            %584 = vmatpush1.msra.mxu0 0.0
            %585 = vmatprep.subr.mxu0 0.0
            %586 = vmatpush1.msra.mxu0 0.0
            %587 = vmatprep.subr.mxu0 0.0
            %588 = vmatpush1.msra.mxu0 0.0
            %589 = vmatprep.subr.mxu0 0.0
            %590 = vmatpush1.msra.mxu0 %v554
            %591 = vmatprep.subr.mxu0 0.0
            %592 = vmatpush1.msra.mxu0 %v553
            %593 = vmatprep.subr.mxu0 0.0
            %594 = vmatpush1.msra.mxu0 %v552
            %595 = vmatprep.subr.mxu0 0.0
            %596 = vmatpush1.msra.mxu0 %v551
            %597 = vmatprep.subr.mxu0 0.0
            %598 = vmatpush2.msra.mxu0 0.0
            %599 = vmatprep.subr.mxu0 0.0
            %600 = vmatpush2.msra.mxu0 0.0
            %601 = vmatprep.subr.mxu0 0.0
            %602 = vmatpush2.msra.mxu0 0.0
            %603 = vmatprep.subr.mxu0 0.0
            %604 = vmatpush2.msra.mxu0 0.0
            %605 = vmatprep.subr.mxu0 0.0
            %606 = vmatpush2.msra.mxu0 0.0
            %607 = vmatprep.subr.mxu0 0.0
            %608 = vmatpush2.msra.mxu0 0.0
            %609 = vmatprep.subr.mxu0 0.0
            %610 = vmatpush2.msra.mxu0 0.0
            %611 = vmatprep.subr.mxu0 0.0
            %612 = vmatpush2.msra.mxu0 0.0
            %613 = vmatprep.subr.mxu0 0.0
            %614 = vmatpush2.msra.mxu0 0.0
            %615 = vmatprep.subr.mxu0 0.0
            %616 = vmatpush2.msra.mxu0 0.0
            %617 = vmatprep.subr.mxu0 0.0
            %618 = vmatpush2.msra.mxu0 0.0
            %619 = vmatprep.subr.mxu0 0.0
            %620 = vmatpush2.msra.mxu0 0.0
            %621 = vmatprep.subr.mxu0 0.0
            %622 = vmatpush2.msra.mxu0 0.0
            %623 = vmatprep.subr.mxu0 0.0
            %624 = vmatpush2.msra.mxu0 0.0
            %625 = vmatprep.subr.mxu0 0.0
            %626 = vmatpush2.msra.mxu0 0.0
            %627 = vmatprep.subr.mxu0 0.0
            %628 = vmatpush2.msra.mxu0 0.0
            %629 = vmatprep.mubr.f32.mxu0 0.0
            %630 = vmatmul.mubr.f32.gmra.mxu0 %v563
            %v631 = vpop.f32.mrf.mxu0
            %v632 = vadd.f32 %v560, %v631
            %v633 = vpop.f32.mrf.mxu0
            %634 = vdwg.mxu0
            %s635 = scalar_lea.vmem [#allocation2], %s519
            %vm636 = vcmask 64512
            %637 = vst.msk [vmem:[%s635] sm:$0xff] %vm636, %v632
            %639 = vrot.lane.b32.xlu0 %v632, 96
            %v640 = vpop.permute.xlu0 %639
            %s642 = scalar_lea.vmem [#allocation3], %s519
            %643 = vst.msk [vmem:[%s642] sm:$0xff] %vm636, %v640
            %644 = vrot.lane.b32.xlu0 %v632, 120
            %v645 = vpop.permute.xlu0 %644
            %s647 = sadd.s32 %s519, 16
            %s648 = scalar_lea.vmem [#allocation2], %s647
            %649 = vst.msk [vmem:[%s648] sm:$0xff] %vm636, %v645
            %650 = vrot.lane.b32.xlu0 %v632, 88
            %v651 = vpop.permute.xlu0 %650
            %s653 = scalar_lea.vmem [#allocation3], %s647
            %654 = vst.msk [vmem:[%s653] sm:$0xff] %vm636, %v651
            %655 = vrot.lane.b32.xlu0 %v632, 112
            %v656 = vpop.permute.xlu0 %655
            %s658 = sadd.s32 %s519, 32
            %s659 = scalar_lea.vmem [#allocation2], %s658
            %660 = vst.msk [vmem:[%s659] sm:$0xff] %vm636, %v656
            %661 = vrot.lane.b32.xlu0 %v632, 80
            %v662 = vpop.permute.xlu0 %661
            %s664 = scalar_lea.vmem [#allocation3], %s658
            %665 = vst.msk [vmem:[%s664] sm:$0xff] %vm636, %v662
            %666 = vrot.lane.b32.xlu0 %v632, 104
            %v667 = vpop.permute.xlu0 %666
            %s669 = sadd.s32 %s519, 48
            %s670 = scalar_lea.vmem [#allocation2], %s669
            %671 = vst.msk [vmem:[%s670] sm:$0xff] %vm636, %v667
            %672 = vrot.lane.b32.xlu0 %v632, 72
            %v673 = vpop.permute.xlu0 %672
            %s675 = scalar_lea.vmem [#allocation3], %s669
            %676 = vst.msk [vmem:[%s675] sm:$0xff] %vm636, %v673
          $region89: #{tpu_custom_call.1} parent=83 // loop_footer
            %s518 = sadd.s32 1, %s514
          $region90: #{tpu_custom_call.1} parent=83 // loop_footer_branch
            %513 = sbr.rel target = $region86
          $region91: #{tpu_custom_call.1} parent=83 // loop_exit
            _
        $region84: #{tpu_custom_call.1} parent=79 // pred_fallthru
          _
        %s677 = smul.u32 %s34, 8
        %s678 = scalar_lea.vmem %s506, %s677
        %v679 = vld [vmem:[%s678] sm:$0xff]
        %vm680 = vcmask 261120
        %v681 = vsel %vm680, %v679, 0.0
        %682 = vadd.xlane.f32.xlu0 %v681
        %v683 = vpop.xlane.xlu0 %682
        %v684 = vrcp.pop 32.0
        %v685 = vmul.f32 %v683, %v684
        %v686 = vsub.f32 %v679, %v685
        %v687 = vmul.f32 %v686, %v686
        %v688 = vsel %vm680, %v687, 0.0
        %689 = vadd.xlane.f32.xlu0 %v688
        %v690 = vpop.xlane.xlu0 %689
        %v691 = vmul.f32 %v690, %v684
        %v692 = vadd.f32 %v691, 1e-05
        %v693 = vrsqrt.pop %v692
        %v694 = vmul.f32 %v686, %v693
        %v696 = vlaneseq
        %v697 = vshrl.u32 %v696, 7
        %v698 = vsub.s32 0, %v697
        %v699 = vrot.slane %v507, %v698
        %v701 = vmul.f32 %v694, %v699
        %v703 = vlaneseq
        %v704 = vshrl.u32 %v703, 7
        %v705 = vsub.s32 0, %v704
        %v706 = vrot.slane %v508, %v705
        %v708 = vadd.f32 %v701, %v706
        %v709 = vld [vmem:[%s1] sm:$0xff]
        %v710 = vld [vmem:[%s1 + $0x8] sm:$0xff]
        %v711 = vld [vmem:[%s1 + $0x10] sm:$0xff]
        %v712 = vld [vmem:[%s1 + $0x18] sm:$0xff]
        %v713 = vld [vmem:[%s2] sm:$0x1]
        %v715 = vlaneseq
        %v716 = vshrl.u32 %v715, 7
        %v717 = vsub.s32 0, %v716
        %v718 = vrot.slane %v713, %v717
        %v721 = vsel %vm680, %v708, 0
        %723 = vmatprep.subr.mxu0 0.0
        %724 = vmatpush1.msra.mxu0 0.0
        %725 = vmatprep.subr.mxu0 0.0
        %726 = vmatpush1.msra.mxu0 0.0
        %727 = vmatprep.subr.mxu0 0.0
        %728 = vmatpush1.msra.mxu0 0.0
        %729 = vmatprep.subr.mxu0 0.0
        %730 = vmatpush1.msra.mxu0 0.0
        %731 = vmatprep.subr.mxu0 0.0
        %732 = vmatpush1.msra.mxu0 0.0
        %733 = vmatprep.subr.mxu0 0.0
        %734 = vmatpush1.msra.mxu0 0.0
        %735 = vmatprep.subr.mxu0 0.0
        %736 = vmatpush1.msra.mxu0 0.0
        %737 = vmatprep.subr.mxu0 0.0
        %738 = vmatpush1.msra.mxu0 0.0
        %739 = vmatprep.subr.mxu0 0.0
        %740 = vmatpush1.msra.mxu0 0.0
        %741 = vmatprep.subr.mxu0 0.0
        %742 = vmatpush1.msra.mxu0 0.0
        %743 = vmatprep.subr.mxu0 0.0
        %744 = vmatpush1.msra.mxu0 0.0
        %745 = vmatprep.subr.mxu0 0.0
        %746 = vmatpush1.msra.mxu0 0.0
        %747 = vmatprep.subr.mxu0 0.0
        %748 = vmatpush1.msra.mxu0 %v712
        %749 = vmatprep.subr.mxu0 0.0
        %750 = vmatpush1.msra.mxu0 %v711
        %751 = vmatprep.subr.mxu0 0.0
        %752 = vmatpush1.msra.mxu0 %v710
        %753 = vmatprep.subr.mxu0 0.0
        %754 = vmatpush1.msra.mxu0 %v709
        %755 = vmatprep.subr.mxu0 0.0
        %756 = vmatpush2.msra.mxu0 0.0
        %757 = vmatprep.subr.mxu0 0.0
        %758 = vmatpush2.msra.mxu0 0.0
        %759 = vmatprep.subr.mxu0 0.0
        %760 = vmatpush2.msra.mxu0 0.0
        %761 = vmatprep.subr.mxu0 0.0
        %762 = vmatpush2.msra.mxu0 0.0
        %763 = vmatprep.subr.mxu0 0.0
        %764 = vmatpush2.msra.mxu0 0.0
        %765 = vmatprep.subr.mxu0 0.0
        %766 = vmatpush2.msra.mxu0 0.0
        %767 = vmatprep.subr.mxu0 0.0
        %768 = vmatpush2.msra.mxu0 0.0
        %769 = vmatprep.subr.mxu0 0.0
        %770 = vmatpush2.msra.mxu0 0.0
        %771 = vmatprep.subr.mxu0 0.0
        %772 = vmatpush2.msra.mxu0 0.0
        %773 = vmatprep.subr.mxu0 0.0
        %774 = vmatpush2.msra.mxu0 0.0
        %775 = vmatprep.subr.mxu0 0.0
        %776 = vmatpush2.msra.mxu0 0.0
        %777 = vmatprep.subr.mxu0 0.0
        %778 = vmatpush2.msra.mxu0 0.0
        %779 = vmatprep.subr.mxu0 0.0
        %780 = vmatpush2.msra.mxu0 0.0
        %781 = vmatprep.subr.mxu0 0.0
        %782 = vmatpush2.msra.mxu0 0.0
        %783 = vmatprep.subr.mxu0 0.0
        %784 = vmatpush2.msra.mxu0 0.0
        %785 = vmatprep.subr.mxu0 0.0
        %786 = vmatpush2.msra.mxu0 0.0
        %787 = vmatprep.mubr.f32.mxu0 0.0
        %788 = vmatmul.mubr.f32.gmra.mxu0 %v721
        %v789 = vpop.f32.mrf.mxu0
        %v790 = vadd.f32 %v718, %v789
        %v791 = vpop.f32.mrf.mxu0
        %792 = vdwg.mxu0
        %v793 = vmul.f32 %v790, 0.35355338
        %vm794 = vcmask 64512
        %795 = vst.msk [vmem:[#allocation4] sm:$0xff] %vm794, %v793
        %797 = vrot.lane.b32.xlu0 %v793, 120
        %v798 = vpop.permute.xlu0 %797
        %s800 = scalar_lea.vmem [#allocation4], 8
        %801 = vst.msk [vmem:[%s800] sm:$0xff] %vm794, %v798
        %802 = vrot.lane.b32.xlu0 %v793, 112
        %v803 = vpop.permute.xlu0 %802
        %s805 = scalar_lea.vmem [#allocation4], 16
        %806 = vst.msk [vmem:[%s805] sm:$0xff] %vm794, %v803
        %807 = vrot.lane.b32.xlu0 %v793, 104
        %v808 = vpop.permute.xlu0 %807
        %s810 = scalar_lea.vmem [#allocation4], 24
        %811 = vst.msk [vmem:[%s810] sm:$0xff] %vm794, %v808
        %v812 = vld [vmem:[#allocation4] sm:$0xff]
        %v813 = vld [vmem:[#allocation4 + $0x8] sm:$0xff]
        %v814 = vld [vmem:[#allocation4 + $0x10] sm:$0xff]
        %v815 = vld [vmem:[#allocation4 + $0x18] sm:$0xff]
        loop: start=0, step=1, limit=2
        $region92: #{tpu_custom_call.1} parent=79 // loop_pre_header
          _
        $region93: #{tpu_custom_call.1} parent=79 // loop_header
          %s817 = sphi 0, %s821
          %p818 = scmp.ge.s32.totalorder %s817, 2
          %v822 = vphi -inf, %v1161
          %v823 = vphi -inf, %v1162
          %v824 = vphi -inf, %v1163
          %v825 = vphi -inf, %v1164
          %v826 = vphi 0.0, %v1205
          %v827 = vphi 0.0, %v1206
          %v828 = vphi 0.0, %v1207
          %v829 = vphi 0.0, %v1208
          %v830 = vphi 0.0, %v1505
          %v831 = vphi 0.0, %v1506
          %v832 = vphi 0.0, %v1507
          %v833 = vphi 0.0, %v1508
        $region94: #{tpu_custom_call.1} parent=79 // loop_header_branch
          %820 = sbr.rel (%p818) target = $region98
        $region95: #{tpu_custom_call.1} parent=79 // loop_body
          %s834 = smul.u32 %s817, 8
          %s835 = scalar_lea.vmem [#allocation2], %s834
          %v836 = vld [vmem:[%s835] sm:$0xff]
          %v837 = vld [vmem:[%s835 + $0x10] sm:$0xff]
          %v838 = vld [vmem:[%s835 + $0x20] sm:$0xff]
          %v839 = vld [vmem:[%s835 + $0x30] sm:$0xff]
          %s840 = scalar_lea.vmem [#allocation3], %s834
          %v841 = vld [vmem:[%s840] sm:$0xff]
          %v842 = vld [vmem:[%s840 + $0x10] sm:$0xff]
          %v843 = vld [vmem:[%s840 + $0x20] sm:$0xff]
          %v844 = vld [vmem:[%s840 + $0x30] sm:$0xff]
          %v846 = vsel %vm794, %v812, 0
          %v849 = vsel %vm794, %v836, 0
          %851 = vmatprep.subr.mxu0 0.0
          %852 = vmatpush1.xpose.msra.mxu0 0.0
          %853 = vmatprep.subr.mxu0 0.0
          %854 = vmatpush1.xpose.msra.mxu0 0.0
          %855 = vmatprep.subr.mxu0 0.0
          %856 = vmatpush1.xpose.msra.mxu0 0.0
          %857 = vmatprep.subr.mxu0 0.0
          %858 = vmatpush1.xpose.msra.mxu0 0.0
          %859 = vmatprep.subr.mxu0 0.0
          %860 = vmatpush1.xpose.msra.mxu0 0.0
          %861 = vmatprep.subr.mxu0 0.0
          %862 = vmatpush1.xpose.msra.mxu0 0.0
          %863 = vmatprep.subr.mxu0 0.0
          %864 = vmatpush1.xpose.msra.mxu0 0.0
          %865 = vmatprep.subr.mxu0 0.0
          %866 = vmatpush1.xpose.msra.mxu0 0.0
          %867 = vmatprep.subr.mxu0 0.0
          %868 = vmatpush1.xpose.msra.mxu0 0.0
          %869 = vmatprep.subr.mxu0 0.0
          %870 = vmatpush1.xpose.msra.mxu0 0.0
          %871 = vmatprep.subr.mxu0 0.0
          %872 = vmatpush1.xpose.msra.mxu0 0.0
          %873 = vmatprep.subr.mxu0 0.0
          %874 = vmatpush1.xpose.msra.mxu0 0.0
          %875 = vmatprep.subr.mxu0 0.0
          %876 = vmatpush1.xpose.msra.mxu0 0.0
          %877 = vmatprep.subr.mxu0 0.0
          %878 = vmatpush1.xpose.msra.mxu0 0.0
          %879 = vmatprep.subr.mxu0 0.0
          %880 = vmatpush1.xpose.msra.mxu0 0.0
          %881 = vmatprep.subr.mxu0 0.0
          %882 = vmatpush1.xpose.msra.mxu0 %v849
          %883 = vmatprep.subr.mxu0 0.0
          %884 = vmatpush2.xpose.msra.mxu0 0.0
          %885 = vmatprep.subr.mxu0 0.0
          %886 = vmatpush2.xpose.msra.mxu0 0.0
          %887 = vmatprep.subr.mxu0 0.0
          %888 = vmatpush2.xpose.msra.mxu0 0.0
          %889 = vmatprep.subr.mxu0 0.0
          %890 = vmatpush2.xpose.msra.mxu0 0.0
          %891 = vmatprep.subr.mxu0 0.0
          %892 = vmatpush2.xpose.msra.mxu0 0.0
          %893 = vmatprep.subr.mxu0 0.0
          %894 = vmatpush2.xpose.msra.mxu0 0.0
          %895 = vmatprep.subr.mxu0 0.0
          %896 = vmatpush2.xpose.msra.mxu0 0.0
          %897 = vmatprep.subr.mxu0 0.0
          %898 = vmatpush2.xpose.msra.mxu0 0.0
          %899 = vmatprep.subr.mxu0 0.0
          %900 = vmatpush2.xpose.msra.mxu0 0.0
          %901 = vmatprep.subr.mxu0 0.0
          %902 = vmatpush2.xpose.msra.mxu0 0.0
          %903 = vmatprep.subr.mxu0 0.0
          %904 = vmatpush2.xpose.msra.mxu0 0.0
          %905 = vmatprep.subr.mxu0 0.0
          %906 = vmatpush2.xpose.msra.mxu0 0.0
          %907 = vmatprep.subr.mxu0 0.0
          %908 = vmatpush2.xpose.msra.mxu0 0.0
          %909 = vmatprep.subr.mxu0 0.0
          %910 = vmatpush2.xpose.msra.mxu0 0.0
          %911 = vmatprep.subr.mxu0 0.0
          %912 = vmatpush2.xpose.msra.mxu0 0.0
          %913 = vmatprep.subr.mxu0 0.0
          %914 = vmatpush2.xpose.msra.mxu0 0.0
          %915 = vmatprep.mubr.f32.mxu0 0.0
          %916 = vmatmul.mubr.f32.gmra.mxu0 %v846
          %v917 = vpop.f32.mrf.mxu0
          %v918 = vadd.f32 0.0, %v917
          %v919 = vpop.f32.mrf.mxu0
          %920 = vdwg.mxu0
          %v922 = vsel %vm794, %v813, 0
          %v925 = vsel %vm794, %v837, 0
          %927 = vmatprep.subr.mxu0 0.0
          %928 = vmatpush1.xpose.msra.mxu0 0.0
          %929 = vmatprep.subr.mxu0 0.0
          %930 = vmatpush1.xpose.msra.mxu0 0.0
          %931 = vmatprep.subr.mxu0 0.0
          %932 = vmatpush1.xpose.msra.mxu0 0.0
          %933 = vmatprep.subr.mxu0 0.0
          %934 = vmatpush1.xpose.msra.mxu0 0.0
          %935 = vmatprep.subr.mxu0 0.0
          %936 = vmatpush1.xpose.msra.mxu0 0.0
          %937 = vmatprep.subr.mxu0 0.0
          %938 = vmatpush1.xpose.msra.mxu0 0.0
          %939 = vmatprep.subr.mxu0 0.0
          %940 = vmatpush1.xpose.msra.mxu0 0.0
          %941 = vmatprep.subr.mxu0 0.0
          %942 = vmatpush1.xpose.msra.mxu0 0.0
          %943 = vmatprep.subr.mxu0 0.0
          %944 = vmatpush1.xpose.msra.mxu0 0.0
          %945 = vmatprep.subr.mxu0 0.0
          %946 = vmatpush1.xpose.msra.mxu0 0.0
          %947 = vmatprep.subr.mxu0 0.0
          %948 = vmatpush1.xpose.msra.mxu0 0.0
          %949 = vmatprep.subr.mxu0 0.0
          %950 = vmatpush1.xpose.msra.mxu0 0.0
          %951 = vmatprep.subr.mxu0 0.0
          %952 = vmatpush1.xpose.msra.mxu0 0.0
          %953 = vmatprep.subr.mxu0 0.0
          %954 = vmatpush1.xpose.msra.mxu0 0.0
          %955 = vmatprep.subr.mxu0 0.0
          %956 = vmatpush1.xpose.msra.mxu0 0.0
          %957 = vmatprep.subr.mxu0 0.0
          %958 = vmatpush1.xpose.msra.mxu0 %v925
          %959 = vmatprep.subr.mxu0 0.0
          %960 = vmatpush2.xpose.msra.mxu0 0.0
          %961 = vmatprep.subr.mxu0 0.0
          %962 = vmatpush2.xpose.msra.mxu0 0.0
          %963 = vmatprep.subr.mxu0 0.0
          %964 = vmatpush2.xpose.msra.mxu0 0.0
          %965 = vmatprep.subr.mxu0 0.0
          %966 = vmatpush2.xpose.msra.mxu0 0.0
          %967 = vmatprep.subr.mxu0 0.0
          %968 = vmatpush2.xpose.msra.mxu0 0.0
          %969 = vmatprep.subr.mxu0 0.0
          %970 = vmatpush2.xpose.msra.mxu0 0.0
          %971 = vmatprep.subr.mxu0 0.0
          %972 = vmatpush2.xpose.msra.mxu0 0.0
          %973 = vmatprep.subr.mxu0 0.0
          %974 = vmatpush2.xpose.msra.mxu0 0.0
          %975 = vmatprep.subr.mxu0 0.0
          %976 = vmatpush2.xpose.msra.mxu0 0.0
          %977 = vmatprep.subr.mxu0 0.0
          %978 = vmatpush2.xpose.msra.mxu0 0.0
          %979 = vmatprep.subr.mxu0 0.0
          %980 = vmatpush2.xpose.msra.mxu0 0.0
          %981 = vmatprep.subr.mxu0 0.0
          %982 = vmatpush2.xpose.msra.mxu0 0.0
          %983 = vmatprep.subr.mxu0 0.0
          %984 = vmatpush2.xpose.msra.mxu0 0.0
          %985 = vmatprep.subr.mxu0 0.0
          %986 = vmatpush2.xpose.msra.mxu0 0.0
          %987 = vmatprep.subr.mxu0 0.0
          %988 = vmatpush2.xpose.msra.mxu0 0.0
          %989 = vmatprep.subr.mxu0 0.0
          %990 = vmatpush2.xpose.msra.mxu0 0.0
          %991 = vmatprep.mubr.f32.mxu0 0.0
          %992 = vmatmul.mubr.f32.gmra.mxu0 %v922
          %v993 = vpop.f32.mrf.mxu0
          %v994 = vadd.f32 0.0, %v993
          %v995 = vpop.f32.mrf.mxu0
          %996 = vdwg.mxu0
          %v998 = vsel %vm794, %v814, 0
          %v1001 = vsel %vm794, %v838, 0
          %1003 = vmatprep.subr.mxu0 0.0
          %1004 = vmatpush1.xpose.msra.mxu0 0.0
          %1005 = vmatprep.subr.mxu0 0.0
          %1006 = vmatpush1.xpose.msra.mxu0 0.0
          %1007 = vmatprep.subr.mxu0 0.0
          %1008 = vmatpush1.xpose.msra.mxu0 0.0
          %1009 = vmatprep.subr.mxu0 0.0
          %1010 = vmatpush1.xpose.msra.mxu0 0.0
          %1011 = vmatprep.subr.mxu0 0.0
          %1012 = vmatpush1.xpose.msra.mxu0 0.0
          %1013 = vmatprep.subr.mxu0 0.0
          %1014 = vmatpush1.xpose.msra.mxu0 0.0
          %1015 = vmatprep.subr.mxu0 0.0
          %1016 = vmatpush1.xpose.msra.mxu0 0.0
          %1017 = vmatprep.subr.mxu0 0.0
          %1018 = vmatpush1.xpose.msra.mxu0 0.0
          %1019 = vmatprep.subr.mxu0 0.0
          %1020 = vmatpush1.xpose.msra.mxu0 0.0
          %1021 = vmatprep.subr.mxu0 0.0
          %1022 = vmatpush1.xpose.msra.mxu0 0.0
          %1023 = vmatprep.subr.mxu0 0.0
          %1024 = vmatpush1.xpose.msra.mxu0 0.0
          %1025 = vmatprep.subr.mxu0 0.0
          %1026 = vmatpush1.xpose.msra.mxu0 0.0
          %1027 = vmatprep.subr.mxu0 0.0
          %1028 = vmatpush1.xpose.msra.mxu0 0.0
          %1029 = vmatprep.subr.mxu0 0.0
          %1030 = vmatpush1.xpose.msra.mxu0 0.0
          %1031 = vmatprep.subr.mxu0 0.0
          %1032 = vmatpush1.xpose.msra.mxu0 0.0
          %1033 = vmatprep.subr.mxu0 0.0
          %1034 = vmatpush1.xpose.msra.mxu0 %v1001
          %1035 = vmatprep.subr.mxu0 0.0
          %1036 = vmatpush2.xpose.msra.mxu0 0.0
          %1037 = vmatprep.subr.mxu0 0.0
          %1038 = vmatpush2.xpose.msra.mxu0 0.0
          %1039 = vmatprep.subr.mxu0 0.0
          %1040 = vmatpush2.xpose.msra.mxu0 0.0
          %1041 = vmatprep.subr.mxu0 0.0
          %1042 = vmatpush2.xpose.msra.mxu0 0.0
          %1043 = vmatprep.subr.mxu0 0.0
          %1044 = vmatpush2.xpose.msra.mxu0 0.0
          %1045 = vmatprep.subr.mxu0 0.0
          %1046 = vmatpush2.xpose.msra.mxu0 0.0
          %1047 = vmatprep.subr.mxu0 0.0
          %1048 = vmatpush2.xpose.msra.mxu0 0.0
          %1049 = vmatprep.subr.mxu0 0.0
          %1050 = vmatpush2.xpose.msra.mxu0 0.0
          %1051 = vmatprep.subr.mxu0 0.0
          %1052 = vmatpush2.xpose.msra.mxu0 0.0
          %1053 = vmatprep.subr.mxu0 0.0
          %1054 = vmatpush2.xpose.msra.mxu0 0.0
          %1055 = vmatprep.subr.mxu0 0.0
          %1056 = vmatpush2.xpose.msra.mxu0 0.0
          %1057 = vmatprep.subr.mxu0 0.0
          %1058 = vmatpush2.xpose.msra.mxu0 0.0
          %1059 = vmatprep.subr.mxu0 0.0
          %1060 = vmatpush2.xpose.msra.mxu0 0.0
          %1061 = vmatprep.subr.mxu0 0.0
          %1062 = vmatpush2.xpose.msra.mxu0 0.0
          %1063 = vmatprep.subr.mxu0 0.0
          %1064 = vmatpush2.xpose.msra.mxu0 0.0
          %1065 = vmatprep.subr.mxu0 0.0
          %1066 = vmatpush2.xpose.msra.mxu0 0.0
          %1067 = vmatprep.mubr.f32.mxu0 0.0
          %1068 = vmatmul.mubr.f32.gmra.mxu0 %v998
          %v1069 = vpop.f32.mrf.mxu0
          %v1070 = vadd.f32 0.0, %v1069
          %v1071 = vpop.f32.mrf.mxu0
          %1072 = vdwg.mxu0
          %v1074 = vsel %vm794, %v815, 0
          %v1077 = vsel %vm794, %v839, 0
          %1079 = vmatprep.subr.mxu0 0.0
          %1080 = vmatpush1.xpose.msra.mxu0 0.0
          %1081 = vmatprep.subr.mxu0 0.0
          %1082 = vmatpush1.xpose.msra.mxu0 0.0
          %1083 = vmatprep.subr.mxu0 0.0
          %1084 = vmatpush1.xpose.msra.mxu0 0.0
          %1085 = vmatprep.subr.mxu0 0.0
          %1086 = vmatpush1.xpose.msra.mxu0 0.0
          %1087 = vmatprep.subr.mxu0 0.0
          %1088 = vmatpush1.xpose.msra.mxu0 0.0
          %1089 = vmatprep.subr.mxu0 0.0
          %1090 = vmatpush1.xpose.msra.mxu0 0.0
          %1091 = vmatprep.subr.mxu0 0.0
          %1092 = vmatpush1.xpose.msra.mxu0 0.0
          %1093 = vmatprep.subr.mxu0 0.0
          %1094 = vmatpush1.xpose.msra.mxu0 0.0
          %1095 = vmatprep.subr.mxu0 0.0
          %1096 = vmatpush1.xpose.msra.mxu0 0.0
          %1097 = vmatprep.subr.mxu0 0.0
          %1098 = vmatpush1.xpose.msra.mxu0 0.0
          %1099 = vmatprep.subr.mxu0 0.0
          %1100 = vmatpush1.xpose.msra.mxu0 0.0
          %1101 = vmatprep.subr.mxu0 0.0
          %1102 = vmatpush1.xpose.msra.mxu0 0.0
          %1103 = vmatprep.subr.mxu0 0.0
          %1104 = vmatpush1.xpose.msra.mxu0 0.0
          %1105 = vmatprep.subr.mxu0 0.0
          %1106 = vmatpush1.xpose.msra.mxu0 0.0
          %1107 = vmatprep.subr.mxu0 0.0
          %1108 = vmatpush1.xpose.msra.mxu0 0.0
          %1109 = vmatprep.subr.mxu0 0.0
          %1110 = vmatpush1.xpose.msra.mxu0 %v1077
          %1111 = vmatprep.subr.mxu0 0.0
          %1112 = vmatpush2.xpose.msra.mxu0 0.0
          %1113 = vmatprep.subr.mxu0 0.0
          %1114 = vmatpush2.xpose.msra.mxu0 0.0
          %1115 = vmatprep.subr.mxu0 0.0
          %1116 = vmatpush2.xpose.msra.mxu0 0.0
          %1117 = vmatprep.subr.mxu0 0.0
          %1118 = vmatpush2.xpose.msra.mxu0 0.0
          %1119 = vmatprep.subr.mxu0 0.0
          %1120 = vmatpush2.xpose.msra.mxu0 0.0
          %1121 = vmatprep.subr.mxu0 0.0
          %1122 = vmatpush2.xpose.msra.mxu0 0.0
          %1123 = vmatprep.subr.mxu0 0.0
          %1124 = vmatpush2.xpose.msra.mxu0 0.0
          %1125 = vmatprep.subr.mxu0 0.0
          %1126 = vmatpush2.xpose.msra.mxu0 0.0
          %1127 = vmatprep.subr.mxu0 0.0
          %1128 = vmatpush2.xpose.msra.mxu0 0.0
          %1129 = vmatprep.subr.mxu0 0.0
          %1130 = vmatpush2.xpose.msra.mxu0 0.0
          %1131 = vmatprep.subr.mxu0 0.0
          %1132 = vmatpush2.xpose.msra.mxu0 0.0
          %1133 = vmatprep.subr.mxu0 0.0
          %1134 = vmatpush2.xpose.msra.mxu0 0.0
          %1135 = vmatprep.subr.mxu0 0.0
          %1136 = vmatpush2.xpose.msra.mxu0 0.0
          %1137 = vmatprep.subr.mxu0 0.0
          %1138 = vmatpush2.xpose.msra.mxu0 0.0
          %1139 = vmatprep.subr.mxu0 0.0
          %1140 = vmatpush2.xpose.msra.mxu0 0.0
          %1141 = vmatprep.subr.mxu0 0.0
          %1142 = vmatpush2.xpose.msra.mxu0 0.0
          %1143 = vmatprep.mubr.f32.mxu0 0.0
          %1144 = vmatmul.mubr.f32.gmra.mxu0 %v1074
          %v1145 = vpop.f32.mrf.mxu0
          %v1146 = vadd.f32 0.0, %v1145
          %v1147 = vpop.f32.mrf.mxu0
          %1148 = vdwg.mxu0
          %v1149 = vsel %vm794, %v918, -inf
          %1150 = vmax.xlane.f32.xlu0 %v1149
          %v1151 = vpop.xlane.xlu0 %1150
          %v1152 = vsel %vm794, %v994, -inf
          %1153 = vmax.xlane.f32.xlu0 %v1152
          %v1154 = vpop.xlane.xlu0 %1153
          %v1155 = vsel %vm794, %v1070, -inf
          %1156 = vmax.xlane.f32.xlu0 %v1155
          %v1157 = vpop.xlane.xlu0 %1156
          %v1158 = vsel %vm794, %v1146, -inf
          %1159 = vmax.xlane.f32.xlu0 %v1158
          %v1160 = vpop.xlane.xlu0 %1159
          %v1161 = vmax.f32 %v822, %v1151
          %v1162 = vmax.f32 %v823, %v1154
          %v1163 = vmax.f32 %v824, %v1157
          %v1164 = vmax.f32 %v825, %v1160
          %v1165 = vsub.f32 %v822, %v1161
          %v1166 = vsub.f32 %v823, %v1162
          %v1167 = vsub.f32 %v824, %v1163
          %v1168 = vsub.f32 %v825, %v1164
          %v1169 = vmul.f32 %v1165, 1.442695
          %v1170 = vpow.pop %v1169
          %v1171 = vmul.f32 %v1166, 1.442695
          %v1172 = vpow.pop %v1171
          %v1173 = vmul.f32 %v1167, 1.442695
          %v1174 = vpow.pop %v1173
          %v1175 = vmul.f32 %v1168, 1.442695
          %v1176 = vpow.pop %v1175
          %v1177 = vsub.f32 %v918, %v1161
          %v1178 = vsub.f32 %v994, %v1162
          %v1179 = vsub.f32 %v1070, %v1163
          %v1180 = vsub.f32 %v1146, %v1164
          %v1181 = vmul.f32 %v1177, 1.442695
          %v1182 = vpow.pop %v1181
          %v1183 = vmul.f32 %v1178, 1.442695
          %v1184 = vpow.pop %v1183
          %v1185 = vmul.f32 %v1179, 1.442695
          %v1186 = vpow.pop %v1185
          %v1187 = vmul.f32 %v1180, 1.442695
          %v1188 = vpow.pop %v1187
          %v1189 = vmul.f32 %v1170, %v826
          %v1190 = vmul.f32 %v1172, %v827
          %v1191 = vmul.f32 %v1174, %v828
          %v1192 = vmul.f32 %v1176, %v829
          %v1193 = vsel %vm794, %v1182, 0.0
          %1194 = vadd.xlane.f32.xlu0 %v1193
          %v1195 = vpop.xlane.xlu0 %1194
          %v1196 = vsel %vm794, %v1184, 0.0
          %1197 = vadd.xlane.f32.xlu0 %v1196
          %v1198 = vpop.xlane.xlu0 %1197
          %v1199 = vsel %vm794, %v1186, 0.0
          %1200 = vadd.xlane.f32.xlu0 %v1199
          %v1201 = vpop.xlane.xlu0 %1200
          %v1202 = vsel %vm794, %v1188, 0.0
          %1203 = vadd.xlane.f32.xlu0 %v1202
          %v1204 = vpop.xlane.xlu0 %1203
          %v1205 = vadd.f32 %v1189, %v1195
          %v1206 = vadd.f32 %v1190, %v1198
          %v1207 = vadd.f32 %v1191, %v1201
          %v1208 = vadd.f32 %v1192, %v1204
          %v1209 = vmul.f32 %v1170, %v830
          %v1210 = vmul.f32 %v1172, %v831
          %v1211 = vmul.f32 %v1174, %v832
          %v1212 = vmul.f32 %v1176, %v833
          %v1214 = vsel %vm794, %v1182, 0
          %1216 = vmatprep.subr.mxu0 0.0
          %1217 = vmatpush1.msra.mxu0 0.0
          %1218 = vmatprep.subr.mxu0 0.0
          %1219 = vmatpush1.msra.mxu0 0.0
          %1220 = vmatprep.subr.mxu0 0.0
          %1221 = vmatpush1.msra.mxu0 0.0
          %1222 = vmatprep.subr.mxu0 0.0
          %1223 = vmatpush1.msra.mxu0 0.0
          %1224 = vmatprep.subr.mxu0 0.0
          %1225 = vmatpush1.msra.mxu0 0.0
          %1226 = vmatprep.subr.mxu0 0.0
          %1227 = vmatpush1.msra.mxu0 0.0
          %1228 = vmatprep.subr.mxu0 0.0
          %1229 = vmatpush1.msra.mxu0 0.0
          %1230 = vmatprep.subr.mxu0 0.0
          %1231 = vmatpush1.msra.mxu0 0.0
          %1232 = vmatprep.subr.mxu0 0.0
          %1233 = vmatpush1.msra.mxu0 0.0
          %1234 = vmatprep.subr.mxu0 0.0
          %1235 = vmatpush1.msra.mxu0 0.0
          %1236 = vmatprep.subr.mxu0 0.0
          %1237 = vmatpush1.msra.mxu0 0.0
          %1238 = vmatprep.subr.mxu0 0.0
          %1239 = vmatpush1.msra.mxu0 0.0
          %1240 = vmatprep.subr.mxu0 0.0
          %1241 = vmatpush1.msra.mxu0 0.0
          %1242 = vmatprep.subr.mxu0 0.0
          %1243 = vmatpush1.msra.mxu0 0.0
          %1244 = vmatprep.subr.mxu0 0.0
          %1245 = vmatpush1.msra.mxu0 0.0
          %1246 = vmatprep.subr.mxu0 0.0
          %1247 = vmatpush1.msra.mxu0 %v841
          %1248 = vmatprep.subr.mxu0 0.0
          %1249 = vmatpush2.msra.mxu0 0.0
          %1250 = vmatprep.subr.mxu0 0.0
          %1251 = vmatpush2.msra.mxu0 0.0
          %1252 = vmatprep.subr.mxu0 0.0
          %1253 = vmatpush2.msra.mxu0 0.0
          %1254 = vmatprep.subr.mxu0 0.0
          %1255 = vmatpush2.msra.mxu0 0.0
          %1256 = vmatprep.subr.mxu0 0.0
          %1257 = vmatpush2.msra.mxu0 0.0
          %1258 = vmatprep.subr.mxu0 0.0
          %1259 = vmatpush2.msra.mxu0 0.0
          %1260 = vmatprep.subr.mxu0 0.0
          %1261 = vmatpush2.msra.mxu0 0.0
          %1262 = vmatprep.subr.mxu0 0.0
          %1263 = vmatpush2.msra.mxu0 0.0
          %1264 = vmatprep.subr.mxu0 0.0
          %1265 = vmatpush2.msra.mxu0 0.0
          %1266 = vmatprep.subr.mxu0 0.0
          %1267 = vmatpush2.msra.mxu0 0.0
          %1268 = vmatprep.subr.mxu0 0.0
          %1269 = vmatpush2.msra.mxu0 0.0
          %1270 = vmatprep.subr.mxu0 0.0
          %1271 = vmatpush2.msra.mxu0 0.0
          %1272 = vmatprep.subr.mxu0 0.0
          %1273 = vmatpush2.msra.mxu0 0.0
          %1274 = vmatprep.subr.mxu0 0.0
          %1275 = vmatpush2.msra.mxu0 0.0
          %1276 = vmatprep.subr.mxu0 0.0
          %1277 = vmatpush2.msra.mxu0 0.0
          %1278 = vmatprep.subr.mxu0 0.0
          %1279 = vmatpush2.msra.mxu0 0.0
          %1280 = vmatprep.mubr.f32.mxu0 0.0
          %1281 = vmatmul.mubr.f32.gmra.mxu0 %v1214
          %v1282 = vpop.f32.mrf.mxu0
          %v1283 = vadd.f32 0.0, %v1282
          %v1284 = vpop.f32.mrf.mxu0
          %1285 = vdwg.mxu0
          %v1287 = vsel %vm794, %v1184, 0
          %1289 = vmatprep.subr.mxu0 0.0
          %1290 = vmatpush1.msra.mxu0 0.0
          %1291 = vmatprep.subr.mxu0 0.0
          %1292 = vmatpush1.msra.mxu0 0.0
          %1293 = vmatprep.subr.mxu0 0.0
          %1294 = vmatpush1.msra.mxu0 0.0
          %1295 = vmatprep.subr.mxu0 0.0
          %1296 = vmatpush1.msra.mxu0 0.0
          %1297 = vmatprep.subr.mxu0 0.0
          %1298 = vmatpush1.msra.mxu0 0.0
          %1299 = vmatprep.subr.mxu0 0.0
          %1300 = vmatpush1.msra.mxu0 0.0
          %1301 = vmatprep.subr.mxu0 0.0
          %1302 = vmatpush1.msra.mxu0 0.0
          %1303 = vmatprep.subr.mxu0 0.0
          %1304 = vmatpush1.msra.mxu0 0.0
          %1305 = vmatprep.subr.mxu0 0.0
          %1306 = vmatpush1.msra.mxu0 0.0
          %1307 = vmatprep.subr.mxu0 0.0
          %1308 = vmatpush1.msra.mxu0 0.0
          %1309 = vmatprep.subr.mxu0 0.0
          %1310 = vmatpush1.msra.mxu0 0.0
          %1311 = vmatprep.subr.mxu0 0.0
          %1312 = vmatpush1.msra.mxu0 0.0
          %1313 = vmatprep.subr.mxu0 0.0
          %1314 = vmatpush1.msra.mxu0 0.0
          %1315 = vmatprep.subr.mxu0 0.0
          %1316 = vmatpush1.msra.mxu0 0.0
          %1317 = vmatprep.subr.mxu0 0.0
          %1318 = vmatpush1.msra.mxu0 0.0
          %1319 = vmatprep.subr.mxu0 0.0
          %1320 = vmatpush1.msra.mxu0 %v842
          %1321 = vmatprep.subr.mxu0 0.0
          %1322 = vmatpush2.msra.mxu0 0.0
          %1323 = vmatprep.subr.mxu0 0.0
          %1324 = vmatpush2.msra.mxu0 0.0
          %1325 = vmatprep.subr.mxu0 0.0
          %1326 = vmatpush2.msra.mxu0 0.0
          %1327 = vmatprep.subr.mxu0 0.0
          %1328 = vmatpush2.msra.mxu0 0.0
          %1329 = vmatprep.subr.mxu0 0.0
          %1330 = vmatpush2.msra.mxu0 0.0
          %1331 = vmatprep.subr.mxu0 0.0
          %1332 = vmatpush2.msra.mxu0 0.0
          %1333 = vmatprep.subr.mxu0 0.0
          %1334 = vmatpush2.msra.mxu0 0.0
          %1335 = vmatprep.subr.mxu0 0.0
          %1336 = vmatpush2.msra.mxu0 0.0
          %1337 = vmatprep.subr.mxu0 0.0
          %1338 = vmatpush2.msra.mxu0 0.0
          %1339 = vmatprep.subr.mxu0 0.0
          %1340 = vmatpush2.msra.mxu0 0.0
          %1341 = vmatprep.subr.mxu0 0.0
          %1342 = vmatpush2.msra.mxu0 0.0
          %1343 = vmatprep.subr.mxu0 0.0
          %1344 = vmatpush2.msra.mxu0 0.0
          %1345 = vmatprep.subr.mxu0 0.0
          %1346 = vmatpush2.msra.mxu0 0.0
          %1347 = vmatprep.subr.mxu0 0.0
          %1348 = vmatpush2.msra.mxu0 0.0
          %1349 = vmatprep.subr.mxu0 0.0
          %1350 = vmatpush2.msra.mxu0 0.0
          %1351 = vmatprep.subr.mxu0 0.0
          %1352 = vmatpush2.msra.mxu0 0.0
          %1353 = vmatprep.mubr.f32.mxu0 0.0
          %1354 = vmatmul.mubr.f32.gmra.mxu0 %v1287
          %v1355 = vpop.f32.mrf.mxu0
          %v1356 = vadd.f32 0.0, %v1355
          %v1357 = vpop.f32.mrf.mxu0
          %1358 = vdwg.mxu0
          %v1360 = vsel %vm794, %v1186, 0
          %1362 = vmatprep.subr.mxu0 0.0
          %1363 = vmatpush1.msra.mxu0 0.0
          %1364 = vmatprep.subr.mxu0 0.0
          %1365 = vmatpush1.msra.mxu0 0.0
          %1366 = vmatprep.subr.mxu0 0.0
          %1367 = vmatpush1.msra.mxu0 0.0
          %1368 = vmatprep.subr.mxu0 0.0
          %1369 = vmatpush1.msra.mxu0 0.0
          %1370 = vmatprep.subr.mxu0 0.0
          %1371 = vmatpush1.msra.mxu0 0.0
          %1372 = vmatprep.subr.mxu0 0.0
          %1373 = vmatpush1.msra.mxu0 0.0
          %1374 = vmatprep.subr.mxu0 0.0
          %1375 = vmatpush1.msra.mxu0 0.0
          %1376 = vmatprep.subr.mxu0 0.0
          %1377 = vmatpush1.msra.mxu0 0.0
          %1378 = vmatprep.subr.mxu0 0.0
          %1379 = vmatpush1.msra.mxu0 0.0
          %1380 = vmatprep.subr.mxu0 0.0
          %1381 = vmatpush1.msra.mxu0 0.0
          %1382 = vmatprep.subr.mxu0 0.0
          %1383 = vmatpush1.msra.mxu0 0.0
          %1384 = vmatprep.subr.mxu0 0.0
          %1385 = vmatpush1.msra.mxu0 0.0
          %1386 = vmatprep.subr.mxu0 0.0
          %1387 = vmatpush1.msra.mxu0 0.0
          %1388 = vmatprep.subr.mxu0 0.0
          %1389 = vmatpush1.msra.mxu0 0.0
          %1390 = vmatprep.subr.mxu0 0.0
          %1391 = vmatpush1.msra.mxu0 0.0
          %1392 = vmatprep.subr.mxu0 0.0
          %1393 = vmatpush1.msra.mxu0 %v843
          %1394 = vmatprep.subr.mxu0 0.0
          %1395 = vmatpush2.msra.mxu0 0.0
          %1396 = vmatprep.subr.mxu0 0.0
          %1397 = vmatpush2.msra.mxu0 0.0
          %1398 = vmatprep.subr.mxu0 0.0
          %1399 = vmatpush2.msra.mxu0 0.0
          %1400 = vmatprep.subr.mxu0 0.0
          %1401 = vmatpush2.msra.mxu0 0.0
          %1402 = vmatprep.subr.mxu0 0.0
          %1403 = vmatpush2.msra.mxu0 0.0
          %1404 = vmatprep.subr.mxu0 0.0
          %1405 = vmatpush2.msra.mxu0 0.0
          %1406 = vmatprep.subr.mxu0 0.0
          %1407 = vmatpush2.msra.mxu0 0.0
          %1408 = vmatprep.subr.mxu0 0.0
          %1409 = vmatpush2.msra.mxu0 0.0
          %1410 = vmatprep.subr.mxu0 0.0
          %1411 = vmatpush2.msra.mxu0 0.0
          %1412 = vmatprep.subr.mxu0 0.0
          %1413 = vmatpush2.msra.mxu0 0.0
          %1414 = vmatprep.subr.mxu0 0.0
          %1415 = vmatpush2.msra.mxu0 0.0
          %1416 = vmatprep.subr.mxu0 0.0
          %1417 = vmatpush2.msra.mxu0 0.0
          %1418 = vmatprep.subr.mxu0 0.0
          %1419 = vmatpush2.msra.mxu0 0.0
          %1420 = vmatprep.subr.mxu0 0.0
          %1421 = vmatpush2.msra.mxu0 0.0
          %1422 = vmatprep.subr.mxu0 0.0
          %1423 = vmatpush2.msra.mxu0 0.0
          %1424 = vmatprep.subr.mxu0 0.0
          %1425 = vmatpush2.msra.mxu0 0.0
          %1426 = vmatprep.mubr.f32.mxu0 0.0
          %1427 = vmatmul.mubr.f32.gmra.mxu0 %v1360
          %v1428 = vpop.f32.mrf.mxu0
          %v1429 = vadd.f32 0.0, %v1428
          %v1430 = vpop.f32.mrf.mxu0
          %1431 = vdwg.mxu0
          %v1433 = vsel %vm794, %v1188, 0
          %1435 = vmatprep.subr.mxu0 0.0
          %1436 = vmatpush1.msra.mxu0 0.0
          %1437 = vmatprep.subr.mxu0 0.0
          %1438 = vmatpush1.msra.mxu0 0.0
          %1439 = vmatprep.subr.mxu0 0.0
          %1440 = vmatpush1.msra.mxu0 0.0
          %1441 = vmatprep.subr.mxu0 0.0
          %1442 = vmatpush1.msra.mxu0 0.0
          %1443 = vmatprep.subr.mxu0 0.0
          %1444 = vmatpush1.msra.mxu0 0.0
          %1445 = vmatprep.subr.mxu0 0.0
          %1446 = vmatpush1.msra.mxu0 0.0
          %1447 = vmatprep.subr.mxu0 0.0
          %1448 = vmatpush1.msra.mxu0 0.0
          %1449 = vmatprep.subr.mxu0 0.0
          %1450 = vmatpush1.msra.mxu0 0.0
          %1451 = vmatprep.subr.mxu0 0.0
          %1452 = vmatpush1.msra.mxu0 0.0
          %1453 = vmatprep.subr.mxu0 0.0
          %1454 = vmatpush1.msra.mxu0 0.0
          %1455 = vmatprep.subr.mxu0 0.0
          %1456 = vmatpush1.msra.mxu0 0.0
          %1457 = vmatprep.subr.mxu0 0.0
          %1458 = vmatpush1.msra.mxu0 0.0
          %1459 = vmatprep.subr.mxu0 0.0
          %1460 = vmatpush1.msra.mxu0 0.0
          %1461 = vmatprep.subr.mxu0 0.0
          %1462 = vmatpush1.msra.mxu0 0.0
          %1463 = vmatprep.subr.mxu0 0.0
          %1464 = vmatpush1.msra.mxu0 0.0
          %1465 = vmatprep.subr.mxu0 0.0
          %1466 = vmatpush1.msra.mxu0 %v844
          %1467 = vmatprep.subr.mxu0 0.0
          %1468 = vmatpush2.msra.mxu0 0.0
          %1469 = vmatprep.subr.mxu0 0.0
          %1470 = vmatpush2.msra.mxu0 0.0
          %1471 = vmatprep.subr.mxu0 0.0
          %1472 = vmatpush2.msra.mxu0 0.0
          %1473 = vmatprep.subr.mxu0 0.0
          %1474 = vmatpush2.msra.mxu0 0.0
          %1475 = vmatprep.subr.mxu0 0.0
          %1476 = vmatpush2.msra.mxu0 0.0
          %1477 = vmatprep.subr.mxu0 0.0
          %1478 = vmatpush2.msra.mxu0 0.0
          %1479 = vmatprep.subr.mxu0 0.0
          %1480 = vmatpush2.msra.mxu0 0.0
          %1481 = vmatprep.subr.mxu0 0.0
          %1482 = vmatpush2.msra.mxu0 0.0
          %1483 = vmatprep.subr.mxu0 0.0
          %1484 = vmatpush2.msra.mxu0 0.0
          %1485 = vmatprep.subr.mxu0 0.0
          %1486 = vmatpush2.msra.mxu0 0.0
          %1487 = vmatprep.subr.mxu0 0.0
          %1488 = vmatpush2.msra.mxu0 0.0
          %1489 = vmatprep.subr.mxu0 0.0
          %1490 = vmatpush2.msra.mxu0 0.0
          %1491 = vmatprep.subr.mxu0 0.0
          %1492 = vmatpush2.msra.mxu0 0.0
          %1493 = vmatprep.subr.mxu0 0.0
          %1494 = vmatpush2.msra.mxu0 0.0
          %1495 = vmatprep.subr.mxu0 0.0
          %1496 = vmatpush2.msra.mxu0 0.0
          %1497 = vmatprep.subr.mxu0 0.0
          %1498 = vmatpush2.msra.mxu0 0.0
          %1499 = vmatprep.mubr.f32.mxu0 0.0
          %1500 = vmatmul.mubr.f32.gmra.mxu0 %v1433
          %v1501 = vpop.f32.mrf.mxu0
          %v1502 = vadd.f32 0.0, %v1501
          %v1503 = vpop.f32.mrf.mxu0
          %1504 = vdwg.mxu0
          %v1505 = vadd.f32 %v1209, %v1283
          %v1506 = vadd.f32 %v1210, %v1356
          %v1507 = vadd.f32 %v1211, %v1429
          %v1508 = vadd.f32 %v1212, %v1502
        $region96: #{tpu_custom_call.1} parent=79 // loop_footer
          %s821 = sadd.s32 1, %s817
        $region97: #{tpu_custom_call.1} parent=79 // loop_footer_branch
          %816 = sbr.rel target = $region93
        $region98: #{tpu_custom_call.1} parent=79 // loop_exit
          _
        %v1509 = vrcp.pop %v826
        %v1510 = vmul.f32 %v830, %v1509
        %v1511 = vrcp.pop %v827
        %v1512 = vmul.f32 %v831, %v1511
        %v1513 = vrcp.pop %v828
        %v1514 = vmul.f32 %v832, %v1513
        %v1515 = vrcp.pop %v829
        %v1516 = vmul.f32 %v833, %v1515
        %v1517 = vld [vmem:[%s5] sm:$0xff]
        %s1518 = scalar_lea.vmem %s5, 8
        %v1519 = vld [vmem:[%s1518] sm:$0xff]
        %v1521 = vsel %vm794, %v1512, 0
        %1523 = vmatprep.subr.mxu0 0.0
        %1524 = vmatpush1.msra.mxu0 0.0
        %1525 = vmatprep.subr.mxu0 0.0
        %1526 = vmatpush1.msra.mxu0 0.0
        %1527 = vmatprep.subr.mxu0 0.0
        %1528 = vmatpush1.msra.mxu0 0.0
        %1529 = vmatprep.subr.mxu0 0.0
        %1530 = vmatpush1.msra.mxu0 0.0
        %1531 = vmatprep.subr.mxu0 0.0
        %1532 = vmatpush1.msra.mxu0 0.0
        %1533 = vmatprep.subr.mxu0 0.0
        %1534 = vmatpush1.msra.mxu0 0.0
        %1535 = vmatprep.subr.mxu0 0.0
        %1536 = vmatpush1.msra.mxu0 0.0
        %1537 = vmatprep.subr.mxu0 0.0
        %1538 = vmatpush1.msra.mxu0 0.0
        %1539 = vmatprep.subr.mxu0 0.0
        %1540 = vmatpush1.msra.mxu0 0.0
        %1541 = vmatprep.subr.mxu0 0.0
        %1542 = vmatpush1.msra.mxu0 0.0
        %1543 = vmatprep.subr.mxu0 0.0
        %1544 = vmatpush1.msra.mxu0 0.0
        %1545 = vmatprep.subr.mxu0 0.0
        %1546 = vmatpush1.msra.mxu0 0.0
        %1547 = vmatprep.subr.mxu0 0.0
        %1548 = vmatpush1.msra.mxu0 0.0
        %1549 = vmatprep.subr.mxu0 0.0
        %1550 = vmatpush1.msra.mxu0 0.0
        %1551 = vmatprep.subr.mxu0 0.0
        %1552 = vmatpush1.msra.mxu0 0.0
        %1553 = vmatprep.subr.mxu0 0.0
        %1554 = vmatpush1.msra.mxu0 %v1519
        %1555 = vmatprep.subr.mxu0 0.0
        %1556 = vmatpush2.msra.mxu0 0.0
        %1557 = vmatprep.subr.mxu0 0.0
        %1558 = vmatpush2.msra.mxu0 0.0
        %1559 = vmatprep.subr.mxu0 0.0
        %1560 = vmatpush2.msra.mxu0 0.0
        %1561 = vmatprep.subr.mxu0 0.0
        %1562 = vmatpush2.msra.mxu0 0.0
        %1563 = vmatprep.subr.mxu0 0.0
        %1564 = vmatpush2.msra.mxu0 0.0
        %1565 = vmatprep.subr.mxu0 0.0
        %1566 = vmatpush2.msra.mxu0 0.0
        %1567 = vmatprep.subr.mxu0 0.0
        %1568 = vmatpush2.msra.mxu0 0.0
        %1569 = vmatprep.subr.mxu0 0.0
        %1570 = vmatpush2.msra.mxu0 0.0
        %1571 = vmatprep.subr.mxu0 0.0
        %1572 = vmatpush2.msra.mxu0 0.0
        %1573 = vmatprep.subr.mxu0 0.0
        %1574 = vmatpush2.msra.mxu0 0.0
        %1575 = vmatprep.subr.mxu0 0.0
        %1576 = vmatpush2.msra.mxu0 0.0
        %1577 = vmatprep.subr.mxu0 0.0
        %1578 = vmatpush2.msra.mxu0 0.0
        %1579 = vmatprep.subr.mxu0 0.0
        %1580 = vmatpush2.msra.mxu0 0.0
        %1581 = vmatprep.subr.mxu0 0.0
        %1582 = vmatpush2.msra.mxu0 0.0
        %1583 = vmatprep.subr.mxu0 0.0
        %1584 = vmatpush2.msra.mxu0 0.0
        %1585 = vmatprep.subr.mxu0 0.0
        %1586 = vmatpush2.msra.mxu0 0.0
        %1587 = vmatprep.mubr.f32.mxu0 0.0
        %1588 = vmatmul.mubr.f32.gmra.mxu0 %v1521
        %v1589 = vpop.f32.mrf.mxu0
        %v1590 = vadd.f32 0.0, %v1589
        %v1591 = vpop.f32.mrf.mxu0
        %1592 = vdwg.mxu0
        %v1594 = vsel %vm794, %v1510, 0
        %1596 = vmatprep.subr.mxu0 0.0
        %1597 = vmatpush1.msra.mxu0 0.0
        %1598 = vmatprep.subr.mxu0 0.0
        %1599 = vmatpush1.msra.mxu0 0.0
        %1600 = vmatprep.subr.mxu0 0.0
        %1601 = vmatpush1.msra.mxu0 0.0
        %1602 = vmatprep.subr.mxu0 0.0
        %1603 = vmatpush1.msra.mxu0 0.0
        %1604 = vmatprep.subr.mxu0 0.0
        %1605 = vmatpush1.msra.mxu0 0.0
        %1606 = vmatprep.subr.mxu0 0.0
        %1607 = vmatpush1.msra.mxu0 0.0
        %1608 = vmatprep.subr.mxu0 0.0
        %1609 = vmatpush1.msra.mxu0 0.0
        %1610 = vmatprep.subr.mxu0 0.0
        %1611 = vmatpush1.msra.mxu0 0.0
        %1612 = vmatprep.subr.mxu0 0.0
        %1613 = vmatpush1.msra.mxu0 0.0
        %1614 = vmatprep.subr.mxu0 0.0
        %1615 = vmatpush1.msra.mxu0 0.0
        %1616 = vmatprep.subr.mxu0 0.0
        %1617 = vmatpush1.msra.mxu0 0.0
        %1618 = vmatprep.subr.mxu0 0.0
        %1619 = vmatpush1.msra.mxu0 0.0
        %1620 = vmatprep.subr.mxu0 0.0
        %1621 = vmatpush1.msra.mxu0 0.0
        %1622 = vmatprep.subr.mxu0 0.0
        %1623 = vmatpush1.msra.mxu0 0.0
        %1624 = vmatprep.subr.mxu0 0.0
        %1625 = vmatpush1.msra.mxu0 0.0
        %1626 = vmatprep.subr.mxu0 0.0
        %1627 = vmatpush1.msra.mxu0 %v1517
        %1628 = vmatprep.subr.mxu0 0.0
        %1629 = vmatpush2.msra.mxu0 0.0
        %1630 = vmatprep.subr.mxu0 0.0
        %1631 = vmatpush2.msra.mxu0 0.0
        %1632 = vmatprep.subr.mxu0 0.0
        %1633 = vmatpush2.msra.mxu0 0.0
        %1634 = vmatprep.subr.mxu0 0.0
        %1635 = vmatpush2.msra.mxu0 0.0
        %1636 = vmatprep.subr.mxu0 0.0
        %1637 = vmatpush2.msra.mxu0 0.0
        %1638 = vmatprep.subr.mxu0 0.0
        %1639 = vmatpush2.msra.mxu0 0.0
        %1640 = vmatprep.subr.mxu0 0.0
        %1641 = vmatpush2.msra.mxu0 0.0
        %1642 = vmatprep.subr.mxu0 0.0
        %1643 = vmatpush2.msra.mxu0 0.0
        %1644 = vmatprep.subr.mxu0 0.0
        %1645 = vmatpush2.msra.mxu0 0.0
        %1646 = vmatprep.subr.mxu0 0.0
        %1647 = vmatpush2.msra.mxu0 0.0
        %1648 = vmatprep.subr.mxu0 0.0
        %1649 = vmatpush2.msra.mxu0 0.0
        %1650 = vmatprep.subr.mxu0 0.0
        %1651 = vmatpush2.msra.mxu0 0.0
        %1652 = vmatprep.subr.mxu0 0.0
        %1653 = vmatpush2.msra.mxu0 0.0
        %1654 = vmatprep.subr.mxu0 0.0
        %1655 = vmatpush2.msra.mxu0 0.0
        %1656 = vmatprep.subr.mxu0 0.0
        %1657 = vmatpush2.msra.mxu0 0.0
        %1658 = vmatprep.subr.mxu0 0.0
        %1659 = vmatpush2.msra.mxu0 0.0
        %1660 = vmatprep.mubr.f32.mxu0 0.0
        %1661 = vmatmul.mubr.f32.gmra.mxu0 %v1594
        %v1662 = vpop.f32.mrf.mxu0
        %v1663 = vadd.f32 %v1590, %v1662
        %v1664 = vpop.f32.mrf.mxu0
        %1665 = vdwg.mxu0
        %s1666 = scalar_lea.vmem %s5, 16
        %v1667 = vld [vmem:[%s1666] sm:$0xff]
        %v1669 = vsel %vm794, %v1514, 0
        %1671 = vmatprep.subr.mxu0 0.0
        %1672 = vmatpush1.msra.mxu0 0.0
        %1673 = vmatprep.subr.mxu0 0.0
        %1674 = vmatpush1.msra.mxu0 0.0
        %1675 = vmatprep.subr.mxu0 0.0
        %1676 = vmatpush1.msra.mxu0 0.0
        %1677 = vmatprep.subr.mxu0 0.0
        %1678 = vmatpush1.msra.mxu0 0.0
        %1679 = vmatprep.subr.mxu0 0.0
        %1680 = vmatpush1.msra.mxu0 0.0
        %1681 = vmatprep.subr.mxu0 0.0
        %1682 = vmatpush1.msra.mxu0 0.0
        %1683 = vmatprep.subr.mxu0 0.0
        %1684 = vmatpush1.msra.mxu0 0.0
        %1685 = vmatprep.subr.mxu0 0.0
        %1686 = vmatpush1.msra.mxu0 0.0
        %1687 = vmatprep.subr.mxu0 0.0
        %1688 = vmatpush1.msra.mxu0 0.0
        %1689 = vmatprep.subr.mxu0 0.0
        %1690 = vmatpush1.msra.mxu0 0.0
        %1691 = vmatprep.subr.mxu0 0.0
        %1692 = vmatpush1.msra.mxu0 0.0
        %1693 = vmatprep.subr.mxu0 0.0
        %1694 = vmatpush1.msra.mxu0 0.0
        %1695 = vmatprep.subr.mxu0 0.0
        %1696 = vmatpush1.msra.mxu0 0.0
        %1697 = vmatprep.subr.mxu0 0.0
        %1698 = vmatpush1.msra.mxu0 0.0
        %1699 = vmatprep.subr.mxu0 0.0
        %1700 = vmatpush1.msra.mxu0 0.0
        %1701 = vmatprep.subr.mxu0 0.0
        %1702 = vmatpush1.msra.mxu0 %v1667
        %1703 = vmatprep.subr.mxu0 0.0
        %1704 = vmatpush2.msra.mxu0 0.0
        %1705 = vmatprep.subr.mxu0 0.0
        %1706 = vmatpush2.msra.mxu0 0.0
        %1707 = vmatprep.subr.mxu0 0.0
        %1708 = vmatpush2.msra.mxu0 0.0
        %1709 = vmatprep.subr.mxu0 0.0
        %1710 = vmatpush2.msra.mxu0 0.0
        %1711 = vmatprep.subr.mxu0 0.0
        %1712 = vmatpush2.msra.mxu0 0.0
        %1713 = vmatprep.subr.mxu0 0.0
        %1714 = vmatpush2.msra.mxu0 0.0
        %1715 = vmatprep.subr.mxu0 0.0
        %1716 = vmatpush2.msra.mxu0 0.0
        %1717 = vmatprep.subr.mxu0 0.0
        %1718 = vmatpush2.msra.mxu0 0.0
        %1719 = vmatprep.subr.mxu0 0.0
        %1720 = vmatpush2.msra.mxu0 0.0
        %1721 = vmatprep.subr.mxu0 0.0
        %1722 = vmatpush2.msra.mxu0 0.0
        %1723 = vmatprep.subr.mxu0 0.0
        %1724 = vmatpush2.msra.mxu0 0.0
        %1725 = vmatprep.subr.mxu0 0.0
        %1726 = vmatpush2.msra.mxu0 0.0
        %1727 = vmatprep.subr.mxu0 0.0
        %1728 = vmatpush2.msra.mxu0 0.0
        %1729 = vmatprep.subr.mxu0 0.0
        %1730 = vmatpush2.msra.mxu0 0.0
        %1731 = vmatprep.subr.mxu0 0.0
        %1732 = vmatpush2.msra.mxu0 0.0
        %1733 = vmatprep.subr.mxu0 0.0
        %1734 = vmatpush2.msra.mxu0 0.0
        %1735 = vmatprep.mubr.f32.mxu0 0.0
        %1736 = vmatmul.mubr.f32.gmra.mxu0 %v1669
        %v1737 = vpop.f32.mrf.mxu0
        %v1738 = vadd.f32 0.0, %v1737
        %v1739 = vpop.f32.mrf.mxu0
        %1740 = vdwg.mxu0
        %v1741 = vadd.f32 %v1663, %v1738
        %s1742 = scalar_lea.vmem %s5, 24
        %v1743 = vld [vmem:[%s1742] sm:$0xff]
        %v1745 = vsel %vm794, %v1516, 0
        %1747 = vmatprep.subr.mxu0 0.0
        %1748 = vmatpush1.msra.mxu0 0.0
        %1749 = vmatprep.subr.mxu0 0.0
        %1750 = vmatpush1.msra.mxu0 0.0
        %1751 = vmatprep.subr.mxu0 0.0
        %1752 = vmatpush1.msra.mxu0 0.0
        %1753 = vmatprep.subr.mxu0 0.0
        %1754 = vmatpush1.msra.mxu0 0.0
        %1755 = vmatprep.subr.mxu0 0.0
        %1756 = vmatpush1.msra.mxu0 0.0
        %1757 = vmatprep.subr.mxu0 0.0
        %1758 = vmatpush1.msra.mxu0 0.0
        %1759 = vmatprep.subr.mxu0 0.0
        %1760 = vmatpush1.msra.mxu0 0.0
        %1761 = vmatprep.subr.mxu0 0.0
        %1762 = vmatpush1.msra.mxu0 0.0
        %1763 = vmatprep.subr.mxu0 0.0
        %1764 = vmatpush1.msra.mxu0 0.0
        %1765 = vmatprep.subr.mxu0 0.0
        %1766 = vmatpush1.msra.mxu0 0.0
        %1767 = vmatprep.subr.mxu0 0.0
        %1768 = vmatpush1.msra.mxu0 0.0
        %1769 = vmatprep.subr.mxu0 0.0
        %1770 = vmatpush1.msra.mxu0 0.0
        %1771 = vmatprep.subr.mxu0 0.0
        %1772 = vmatpush1.msra.mxu0 0.0
        %1773 = vmatprep.subr.mxu0 0.0
        %1774 = vmatpush1.msra.mxu0 0.0
        %1775 = vmatprep.subr.mxu0 0.0
        %1776 = vmatpush1.msra.mxu0 0.0
        %1777 = vmatprep.subr.mxu0 0.0
        %1778 = vmatpush1.msra.mxu0 %v1743
        %1779 = vmatprep.subr.mxu0 0.0
        %1780 = vmatpush2.msra.mxu0 0.0
        %1781 = vmatprep.subr.mxu0 0.0
        %1782 = vmatpush2.msra.mxu0 0.0
        %1783 = vmatprep.subr.mxu0 0.0
        %1784 = vmatpush2.msra.mxu0 0.0
        %1785 = vmatprep.subr.mxu0 0.0
        %1786 = vmatpush2.msra.mxu0 0.0
        %1787 = vmatprep.subr.mxu0 0.0
        %1788 = vmatpush2.msra.mxu0 0.0
        %1789 = vmatprep.subr.mxu0 0.0
        %1790 = vmatpush2.msra.mxu0 0.0
        %1791 = vmatprep.subr.mxu0 0.0
        %1792 = vmatpush2.msra.mxu0 0.0
        %1793 = vmatprep.subr.mxu0 0.0
        %1794 = vmatpush2.msra.mxu0 0.0
        %1795 = vmatprep.subr.mxu0 0.0
        %1796 = vmatpush2.msra.mxu0 0.0
        %1797 = vmatprep.subr.mxu0 0.0
        %1798 = vmatpush2.msra.mxu0 0.0
        %1799 = vmatprep.subr.mxu0 0.0
        %1800 = vmatpush2.msra.mxu0 0.0
        %1801 = vmatprep.subr.mxu0 0.0
        %1802 = vmatpush2.msra.mxu0 0.0
        %1803 = vmatprep.subr.mxu0 0.0
        %1804 = vmatpush2.msra.mxu0 0.0
        %1805 = vmatprep.subr.mxu0 0.0
        %1806 = vmatpush2.msra.mxu0 0.0
        %1807 = vmatprep.subr.mxu0 0.0
        %1808 = vmatpush2.msra.mxu0 0.0
        %1809 = vmatprep.subr.mxu0 0.0
        %1810 = vmatpush2.msra.mxu0 0.0
        %1811 = vmatprep.mubr.f32.mxu0 0.0
        %1812 = vmatmul.mubr.f32.gmra.mxu0 %v1745
        %v1813 = vpop.f32.mrf.mxu0
        %v1814 = vadd.f32 0.0, %v1813
        %v1815 = vpop.f32.mrf.mxu0
        %1816 = vdwg.mxu0
        %v1817 = vadd.f32 %v1741, %v1814
        %v1818 = vld [vmem:[%s6] sm:$0x1]
        %v1820 = vlaneseq
        %v1821 = vshrl.u32 %v1820, 7
        %v1822 = vsub.s32 0, %v1821
        %v1823 = vrot.slane %v1818, %v1822
        %v1825 = vadd.f32 %v1817, %v1823
        %v1826 = vadd.f32 %v679, %v1825
        %v1827 = vld [vmem:[%s13] sm:$0x1]
        %v1828 = vld [vmem:[%s14] sm:$0x1]
        %v1829 = vsel %vm680, %v1826, 0.0
        %1830 = vadd.xlane.f32.xlu0 %v1829
        %v1831 = vpop.xlane.xlu0 %1830
        %v1832 = vmul.f32 %v1831, %v684
        %v1833 = vsub.f32 %v1826, %v1832
        %v1834 = vmul.f32 %v1833, %v1833
        %v1835 = vsel %vm680, %v1834, 0.0
        %1836 = vadd.xlane.f32.xlu0 %v1835
        %v1837 = vpop.xlane.xlu0 %1836
        %v1838 = vmul.f32 %v1837, %v684
        %v1839 = vadd.f32 %v1838, 1e-05
        %v1840 = vrsqrt.pop %v1839
        %v1841 = vmul.f32 %v1833, %v1840
        %v1843 = vlaneseq
        %v1844 = vshrl.u32 %v1843, 7
        %v1845 = vsub.s32 0, %v1844
        %v1846 = vrot.slane %v1827, %v1845
        %v1848 = vmul.f32 %v1841, %v1846
        %v1850 = vlaneseq
        %v1851 = vshrl.u32 %v1850, 7
        %v1852 = vsub.s32 0, %v1851
        %v1853 = vrot.slane %v1828, %v1852
        %v1855 = vadd.f32 %v1848, %v1853
        %v1856 = vld [vmem:[%s7] sm:$0xff]
        %v1857 = vld [vmem:[%s7 + $0x8] sm:$0xff]
        %v1858 = vld [vmem:[%s7 + $0x10] sm:$0xff]
        %v1859 = vld [vmem:[%s7 + $0x18] sm:$0xff]
        %v1860 = vld [vmem:[%s8] sm:$0x1]
        %v1862 = vlaneseq
        %v1863 = vshrl.u32 %v1862, 7
        %v1864 = vsub.s32 0, %v1863
        %v1865 = vrot.slane %v1860, %v1864
        %v1868 = vsel %vm680, %v1855, 0
        %1870 = vmatprep.subr.mxu0 0.0
        %1871 = vmatpush1.msra.mxu0 0.0
        %1872 = vmatprep.subr.mxu0 0.0
        %1873 = vmatpush1.msra.mxu0 0.0
        %1874 = vmatprep.subr.mxu0 0.0
        %1875 = vmatpush1.msra.mxu0 0.0
        %1876 = vmatprep.subr.mxu0 0.0
        %1877 = vmatpush1.msra.mxu0 0.0
        %1878 = vmatprep.subr.mxu0 0.0
        %1879 = vmatpush1.msra.mxu0 0.0
        %1880 = vmatprep.subr.mxu0 0.0
        %1881 = vmatpush1.msra.mxu0 0.0
        %1882 = vmatprep.subr.mxu0 0.0
        %1883 = vmatpush1.msra.mxu0 0.0
        %1884 = vmatprep.subr.mxu0 0.0
        %1885 = vmatpush1.msra.mxu0 0.0
        %1886 = vmatprep.subr.mxu0 0.0
        %1887 = vmatpush1.msra.mxu0 0.0
        %1888 = vmatprep.subr.mxu0 0.0
        %1889 = vmatpush1.msra.mxu0 0.0
        %1890 = vmatprep.subr.mxu0 0.0
        %1891 = vmatpush1.msra.mxu0 0.0
        %1892 = vmatprep.subr.mxu0 0.0
        %1893 = vmatpush1.msra.mxu0 0.0
        %1894 = vmatprep.subr.mxu0 0.0
        %1895 = vmatpush1.msra.mxu0 %v1859
        %1896 = vmatprep.subr.mxu0 0.0
        %1897 = vmatpush1.msra.mxu0 %v1858
        %1898 = vmatprep.subr.mxu0 0.0
        %1899 = vmatpush1.msra.mxu0 %v1857
        %1900 = vmatprep.subr.mxu0 0.0
        %1901 = vmatpush1.msra.mxu0 %v1856
        %1902 = vmatprep.subr.mxu0 0.0
        %1903 = vmatpush2.msra.mxu0 0.0
        %1904 = vmatprep.subr.mxu0 0.0
        %1905 = vmatpush2.msra.mxu0 0.0
        %1906 = vmatprep.subr.mxu0 0.0
        %1907 = vmatpush2.msra.mxu0 0.0
        %1908 = vmatprep.subr.mxu0 0.0
        %1909 = vmatpush2.msra.mxu0 0.0
        %1910 = vmatprep.subr.mxu0 0.0
        %1911 = vmatpush2.msra.mxu0 0.0
        %1912 = vmatprep.subr.mxu0 0.0
        %1913 = vmatpush2.msra.mxu0 0.0
        %1914 = vmatprep.subr.mxu0 0.0
        %1915 = vmatpush2.msra.mxu0 0.0
        %1916 = vmatprep.subr.mxu0 0.0
        %1917 = vmatpush2.msra.mxu0 0.0
        %1918 = vmatprep.subr.mxu0 0.0
        %1919 = vmatpush2.msra.mxu0 0.0
        %1920 = vmatprep.subr.mxu0 0.0
        %1921 = vmatpush2.msra.mxu0 0.0
        %1922 = vmatprep.subr.mxu0 0.0
        %1923 = vmatpush2.msra.mxu0 0.0
        %1924 = vmatprep.subr.mxu0 0.0
        %1925 = vmatpush2.msra.mxu0 0.0
        %1926 = vmatprep.subr.mxu0 0.0
        %1927 = vmatpush2.msra.mxu0 0.0
        %1928 = vmatprep.subr.mxu0 0.0
        %1929 = vmatpush2.msra.mxu0 0.0
        %1930 = vmatprep.subr.mxu0 0.0
        %1931 = vmatpush2.msra.mxu0 0.0
        %1932 = vmatprep.subr.mxu0 0.0
        %1933 = vmatpush2.msra.mxu0 0.0
        %1934 = vmatprep.mubr.f32.mxu0 0.0
        %1935 = vmatmul.mubr.f32.gmra.mxu0 %v1868
        %v1936 = vpop.f32.mrf.mxu0
        %v1937 = vadd.f32 %v1865, %v1936
        %v1938 = vpop.f32.mrf.mxu0
        %1939 = vdwg.mxu0
        %v1940 = vmax.f32 %v1937, 0.0
        %v1941 = vld [vmem:[%s9] sm:$0xff]
        %v1942 = vld [vmem:[%s9 + $0x8] sm:$0xff]
        %v1943 = vld [vmem:[%s9 + $0x10] sm:$0xff]
        %v1944 = vld [vmem:[%s9 + $0x18] sm:$0xff]
        %v1945 = vld [vmem:[%s9 + $0x20] sm:$0xff]
        %v1946 = vld [vmem:[%s9 + $0x28] sm:$0xff]
        %v1947 = vld [vmem:[%s9 + $0x30] sm:$0xff]
        %v1948 = vld [vmem:[%s9 + $0x38] sm:$0xff]
        %v1949 = vld [vmem:[%s9 + $0x40] sm:$0xff]
        %v1950 = vld [vmem:[%s9 + $0x48] sm:$0xff]
        %v1951 = vld [vmem:[%s9 + $0x50] sm:$0xff]
        %v1952 = vld [vmem:[%s9 + $0x58] sm:$0xff]
        %v1953 = vld [vmem:[%s9 + $0x60] sm:$0xff]
        %v1954 = vld [vmem:[%s9 + $0x68] sm:$0xff]
        %v1955 = vld [vmem:[%s9 + $0x70] sm:$0xff]
        %v1956 = vld [vmem:[%s9 + $0x78] sm:$0xff]
        %v1957 = vld [vmem:[%s10] sm:$0x1]
        %v1959 = vlaneseq
        %v1960 = vshrl.u32 %v1959, 7
        %v1961 = vsub.s32 0, %v1960
        %v1962 = vrot.slane %v1957, %v1961
        %1964 = vmatprep.subr.mxu0 0.0
        %1965 = vmatpush1.msra.mxu0 %v1956
        %1966 = vmatprep.subr.mxu0 0.0
        %1967 = vmatpush1.msra.mxu0 %v1955
        %1968 = vmatprep.subr.mxu0 0.0
        %1969 = vmatpush1.msra.mxu0 %v1954
        %1970 = vmatprep.subr.mxu0 0.0
        %1971 = vmatpush1.msra.mxu0 %v1953
        %1972 = vmatprep.subr.mxu0 0.0
        %1973 = vmatpush1.msra.mxu0 %v1952
        %1974 = vmatprep.subr.mxu0 0.0
        %1975 = vmatpush1.msra.mxu0 %v1951
        %1976 = vmatprep.subr.mxu0 0.0
        %1977 = vmatpush1.msra.mxu0 %v1950
        %1978 = vmatprep.subr.mxu0 0.0
        %1979 = vmatpush1.msra.mxu0 %v1949
        %1980 = vmatprep.subr.mxu0 0.0
        %1981 = vmatpush1.msra.mxu0 %v1948
        %1982 = vmatprep.subr.mxu0 0.0
        %1983 = vmatpush1.msra.mxu0 %v1947
        %1984 = vmatprep.subr.mxu0 0.0
        %1985 = vmatpush1.msra.mxu0 %v1946
        %1986 = vmatprep.subr.mxu0 0.0
        %1987 = vmatpush1.msra.mxu0 %v1945
        %1988 = vmatprep.subr.mxu0 0.0
        %1989 = vmatpush1.msra.mxu0 %v1944
        %1990 = vmatprep.subr.mxu0 0.0
        %1991 = vmatpush1.msra.mxu0 %v1943
        %1992 = vmatprep.subr.mxu0 0.0
        %1993 = vmatpush1.msra.mxu0 %v1942
        %1994 = vmatprep.subr.mxu0 0.0
        %1995 = vmatpush1.msra.mxu0 %v1941
        %1996 = vmatprep.subr.mxu0 0.0
        %1997 = vmatpush2.msra.mxu0 0.0
        %1998 = vmatprep.subr.mxu0 0.0
        %1999 = vmatpush2.msra.mxu0 0.0
        %2000 = vmatprep.subr.mxu0 0.0
        %2001 = vmatpush2.msra.mxu0 0.0
        %2002 = vmatprep.subr.mxu0 0.0
        %2003 = vmatpush2.msra.mxu0 0.0
        %2004 = vmatprep.subr.mxu0 0.0
        %2005 = vmatpush2.msra.mxu0 0.0
        %2006 = vmatprep.subr.mxu0 0.0
        %2007 = vmatpush2.msra.mxu0 0.0
        %2008 = vmatprep.subr.mxu0 0.0
        %2009 = vmatpush2.msra.mxu0 0.0
        %2010 = vmatprep.subr.mxu0 0.0
        %2011 = vmatpush2.msra.mxu0 0.0
        %2012 = vmatprep.subr.mxu0 0.0
        %2013 = vmatpush2.msra.mxu0 0.0
        %2014 = vmatprep.subr.mxu0 0.0
        %2015 = vmatpush2.msra.mxu0 0.0
        %2016 = vmatprep.subr.mxu0 0.0
        %2017 = vmatpush2.msra.mxu0 0.0
        %2018 = vmatprep.subr.mxu0 0.0
        %2019 = vmatpush2.msra.mxu0 0.0
        %2020 = vmatprep.subr.mxu0 0.0
        %2021 = vmatpush2.msra.mxu0 0.0
        %2022 = vmatprep.subr.mxu0 0.0
        %2023 = vmatpush2.msra.mxu0 0.0
        %2024 = vmatprep.subr.mxu0 0.0
        %2025 = vmatpush2.msra.mxu0 0.0
        %2026 = vmatprep.subr.mxu0 0.0
        %2027 = vmatpush2.msra.mxu0 0.0
        %2028 = vmatprep.mubr.f32.mxu0 0.0
        %2029 = vmatmul.mubr.f32.gmra.mxu0 %v1940
        %v2030 = vpop.f32.mrf.mxu0
        %v2031 = vadd.f32 %v1962, %v2030
        %v2032 = vpop.f32.mrf.mxu0
        %2033 = vdwg.mxu0
        %v2034 = vadd.f32 %v1826, %v2031
        %2035 = vst.msk [vmem:[%s501] sm:$0xff] %vm680, %v2034
        %s2036 = sand.u32 %s371, 1
        %s2037 = scalar_lea.sflag [#allocation6], %s2036
        %s2038 = sand.u32 %s371, 1
        %s2039 = smul.addr %s2038, 8
        %s2040 = scalar_lea.vmem [#allocation5], %s2039
        // Predicated region
        $region99: #{tpu_custom_call.1} parent=79 // pred_check
          %p2041 = pneg %p381
        $region100: #{tpu_custom_call.1} parent=79 // pred_check_branch
          %2043 = sbr.rel (%p2041) target = $region102
        $region101: #{tpu_custom_call.1} parent=79 // pred_region
          %s2045 = ssub.s32 128, 128
          %2046 = vsyncadd %s2037, %s2045
          %s2047 = smul.addr %s33, 2
          %s2048 = sadd.s32 %s34, %s2047
          %s2049 = smul.addr %s2048, 128
          %s2050 = scalar_lea.hbm %s15, %s2049
          %s2052 = sshll.u32 %s2040, 4
          %s2053 = int_to_ptr.vmem [resolvable:$true] %s2052
          %2055 = dma.vmem_to_hbm [thread:$0]  %s2053, 128, %s2050, %s2037
        $region102: #{tpu_custom_call.1} parent=79 // pred_fallthru
          _
      $region80: #{tpu_custom_call.1} parent=5 // pred_fallthru
        _
      %p2056 = scmp.le.s32.totalorder 2, %s24
      // Predicated region
      $region103: #{tpu_custom_call.1} parent=5 // pred_check
        %p2057 = pneg %p2056
      $region104: #{tpu_custom_call.1} parent=5 // pred_check_branch
        %2059 = sbr.rel (%p2057) target = $region106
      $region105: #{tpu_custom_call.1} parent=5 // pred_region
        %s2060 = ssub.s32 %s24, 2
        // Predicated region
        $region107: #{tpu_custom_call.1} parent=105 // pred_check
          %p2061 = pneg %p387
        $region108: #{tpu_custom_call.1} parent=105 // pred_check_branch
          %2063 = sbr.rel (%p2061) target = $region110
        $region109: #{tpu_custom_call.1} parent=105 // pred_region
          %s2064 = sand.u32 %s372, 1
          %s2065 = scalar_lea.sflag [#allocation6], %s2064
          %s2066 = sand.u32 %s372, 1
          %s2067 = smul.addr %s2066, 8
          %s2068 = scalar_lea.vmem [#allocation5], %s2067
          %2069 = dma.done %s2065, 128
        $region110: #{tpu_custom_call.1} parent=105 // pred_fallthru
          _
      $region106: #{tpu_custom_call.1} parent=5 // pred_fallthru
        _
    $region6: #{tpu_custom_call.1} parent=1 // loop_footer
      %s28 = sadd.s32 1, %s24
    $region7: #{tpu_custom_call.1} parent=1 // loop_footer_branch
      %23 = sbr.rel target = $region3
    $region8: #{tpu_custom_call.1} parent=1 // loop_exit
      _
    %2070 = vsyncpa [#allocation6], 1
    %s2071 = scalar_lea.sflag [#allocation6], 1
    %2072 = vsyncpa %s2071, 1

</llo_original>
